<compile_context>
chip_gen: v7x
topology: tpu7x:2x2x1
jax: 0.10.0
libtpu: 0.0.40
codegen_flags: <defaults>
</compile_context>

<pallas_src>
import functools
from math import sqrt

import numpy as np
import jax
import jax.numpy as jnp
from jax.experimental import pallas as pl
from jax.experimental.pallas import tpu as pltpu

# > v5e's 16 MiB default scoped VMEM, comfortably inside v7x's 64 MiB physical VMEM.
VMEM_LIMIT = 32 * 1024 * 1024


# ----------------------------- tiling helpers --------------------------------

def _choose_tile(dim, target, align):
    """Largest tile <= target that exactly divides `dim` and is a multiple of `align`.
    Falls back to the full dim (block == full array dim is always legal)."""
    if dim <= target:
        return dim
    t = (min(target, dim) // align) * align
    while t >= align:
        if dim % t == 0:
            return t
        t -= align
    return dim


def _choose_m_tile(dim, target):
    """Row-tile chooser: prefer 16-aligned (bf16 sublane packing), fall back to 8."""
    t = _choose_tile(dim, target, 16)
    if dim % t == 0 and (t % 16 == 0 or t == dim):
        if t != dim or dim <= target:
            return t
    return _choose_tile(dim, target, 8)


def _spec(shape, index_map, *, single_buffer=False):
    """BlockSpec; constant-index blocks can request single buffering so they do not
    reserve 2x VMEM for data that never changes (feedback #5)."""
    if single_buffer and hasattr(pl, "Buffered"):
        try:
            return pl.BlockSpec(shape, index_map, pipeline_mode=pl.Buffered(1))
        except (TypeError, ValueError):      # older BlockSpec without pipeline_mode
            pass
    return pl.BlockSpec(shape, index_map)


# ------------------------ tiled matmul + bias (QKV proj) ---------------------

def _matmul_bias_kernel(x_ref, w_ref, b_ref, o_ref, acc_ref):
    @pl.when(pl.program_id(2) == 0)
    def _():
        acc_ref[...] = jnp.zeros_like(acc_ref)

    acc_ref[...] += jnp.dot(x_ref[...].astype(jnp.bfloat16),
                            w_ref[...].astype(jnp.bfloat16),
                            preferred_element_type=jnp.float32)

    @pl.when(pl.program_id(2) == pl.num_programs(2) - 1)
    def _():
        o_ref[...] = (acc_ref[...] + b_ref[...].astype(jnp.float32)).astype(o_ref.dtype)


def matmul_bias(x, w, b):
    # x: (M, K) f32, w: (K, N) bf16, b: (N,) f32  ->  (M, N) f32
    M, K = x.shape
    N = w.shape[1]
    tm = _choose_m_tile(M, 512)
    tn = _choose_tile(N, 256, 128)
    tk = _choose_tile(K, 512, 128)
    grid = (M // tm, N // tn, K // tk)
    return pl.pallas_call(
        _matmul_bias_kernel,
        out_shape=jax.ShapeDtypeStruct((M, N), x.dtype),
        grid_spec=pltpu.PrefetchScalarGridSpec(
            num_scalar_prefetch=0, grid=grid,
            in_specs=[pl.BlockSpec((tm, tk), lambda i, j, k: (i, k)),
                      pl.BlockSpec((tk, tn), lambda i, j, k: (k, j)),
                      pl.BlockSpec((1, tn), lambda i, j, k: (0, j))],
            out_specs=pl.BlockSpec((tm, tn), lambda i, j, k: (i, j)),
            scratch_shapes=[pltpu.VMEM((tm, tn), jnp.float32)]),
        compiler_params=pltpu.CompilerParams(
            dimension_semantics=("parallel", "parallel", "arbitrary"),
            vmem_limit_bytes=VMEM_LIMIT),
    )(x, w, b.reshape(1, N))


# ----------------- fused out-projection + residual + LayerNorm ---------------

def _proj_add_ln_kernel(x_ref, c_ref, w_ref, b_ref, g_ref, beta_ref, o_ref):
    y = jnp.dot(c_ref[...].astype(jnp.bfloat16), w_ref[...].astype(jnp.bfloat16),
                preferred_element_type=jnp.float32) + b_ref[...].astype(jnp.float32)
    h = x_ref[...].astype(jnp.float32) + y                      # residual (dropout = 0)
    mean = jnp.mean(h, axis=-1, keepdims=True)
    var = jnp.mean(jnp.square(h - mean), axis=-1, keepdims=True)
    hn = (h - mean) * jax.lax.rsqrt(var + 1e-5)                 # PyTorch LayerNorm eps
    o_ref[...] = (hn * g_ref[...].astype(jnp.float32)
                  + beta_ref[...].astype(jnp.float32)).astype(o_ref.dtype)


def proj_add_layernorm(x, ctx, w, b, g, beta):
    # out = LayerNorm(x + ctx @ w + b)
    M, Hd = x.shape
    tm = _choose_m_tile(M, 256)
    return pl.pallas_call(
        _proj_add_ln_kernel,
        out_shape=jax.ShapeDtypeStruct((M, Hd), x.dtype),
        grid_spec=pltpu.PrefetchScalarGridSpec(
            num_scalar_prefetch=0, grid=(M // tm,),
            in_specs=[pl.BlockSpec((tm, Hd), lambda i: (i, 0)),
                      pl.BlockSpec((tm, Hd), lambda i: (i, 0)),
                      _spec((Hd, Hd), lambda i: (0, 0), single_buffer=True),
                      _spec((1, Hd), lambda i: (0, 0), single_buffer=True),
                      _spec((1, Hd), lambda i: (0, 0), single_buffer=True),
                      _spec((1, Hd), lambda i: (0, 0), single_buffer=True)],
            out_specs=pl.BlockSpec((tm, Hd), lambda i: (i, 0))),
        compiler_params=pltpu.CompilerParams(
            dimension_semantics=("parallel",),
            vmem_limit_bytes=VMEM_LIMIT),
    )(x, ctx, w, b.reshape(1, Hd), g.reshape(1, Hd), beta.reshape(1, Hd))


# ------- fused FFN (conv1 k=1 + ReLU + conv2 k=1) + residual + LayerNorm -----
# The `inter` dimension is streamed in chunks (grid axis 1, "arbitrary"): only
# (Hd, tc) + (tc, Hd) weight slices are VMEM-resident at a time, the (tm, tc)
# intermediate never leaves VMEM, and the second matmul accumulates in f32 scratch.

def _ffn_add_ln_kernel(x_ref, w1_ref, b1_ref, w2_ref, b2_ref, g_ref, beta_ref,
                       o_ref, acc_ref):
    j = pl.program_id(1)

    @pl.when(j == 0)
    def _():
        acc_ref[...] = jnp.zeros_like(acc_ref)

    x = x_ref[...]
    h = jnp.dot(x.astype(jnp.bfloat16), w1_ref[...].astype(jnp.bfloat16),
                preferred_element_type=jnp.float32) + b1_ref[...].astype(jnp.float32)
    h = jnp.maximum(h, 0.0)                                      # ReLU per chunk (exact)
    acc_ref[...] += jnp.dot(h.astype(jnp.bfloat16), w2_ref[...].astype(jnp.bfloat16),
                            preferred_element_type=jnp.float32)

    @pl.when(j == pl.num_programs(1) - 1)
    def _():
        z = x.astype(jnp.float32) + acc_ref[...] + b2_ref[...].astype(jnp.float32)
        mean = jnp.mean(z, axis=-1, keepdims=True)
        var = jnp.mean(jnp.square(z - mean), axis=-1, keepdims=True)
        zn = (z - mean) * jax.lax.rsqrt(var + 1e-5)
        o_ref[...] = (zn * g_ref[...].astype(jnp.float32)
                      + beta_ref[...].astype(jnp.float32)).astype(o_ref.dtype)


def ffn_add_layernorm(x, w1, b1, w2, b2, g, beta):
    M, Hd = x.shape
    inter = w1.shape[1]
    tm = _choose_m_tile(M, 256)
    tc = _choose_tile(inter, 512, 128)        # streamed reduction chunk of `inter`
    grid = (M // tm, inter // tc)
    return pl.pallas_call(
        _ffn_add_ln_kernel,
        out_shape=jax.ShapeDtypeStruct((M, Hd), x.dtype),
        grid_spec=pltpu.PrefetchScalarGridSpec(
            num_scalar_prefetch=0, grid=grid,
            in_specs=[pl.BlockSpec((tm, Hd), lambda i, j: (i, 0)),
                      pl.BlockSpec((Hd, tc), lambda i, j: (0, j)),
                      pl.BlockSpec((1, tc), lambda i, j: (0, j)),
                      pl.BlockSpec((tc, Hd), lambda i, j: (j, 0)),
                      _spec((1, Hd), lambda i, j: (0, 0), single_buffer=True),
                      _spec((1, Hd), lambda i, j: (0, 0), single_buffer=True),
                      _spec((1, Hd), lambda i, j: (0, 0), single_buffer=True)],
            out_specs=pl.BlockSpec((tm, Hd), lambda i, j: (i, 0)),
            scratch_shapes=[pltpu.VMEM((tm, Hd), jnp.float32)]),
        compiler_params=pltpu.CompilerParams(
            dimension_semantics=("parallel", "arbitrary"),
            vmem_limit_bytes=VMEM_LIMIT),
    )(x, w1, b1.reshape(1, inter), w2, b2.reshape(1, Hd),
      g.reshape(1, Hd), beta.reshape(1, Hd))


# -------------------------------- LayerNorm ----------------------------------

def _ln_kernel(x_ref, g_ref, b_ref, o_ref):
    x = x_ref[...].astype(jnp.float32)
    mean = jnp.mean(x, axis=-1, keepdims=True)
    var = jnp.mean(jnp.square(x - mean), axis=-1, keepdims=True)
    xn = (x - mean) * jax.lax.rsqrt(var + 1e-5)
    o_ref[...] = (xn * g_ref[...] + b_ref[...]).astype(o_ref.dtype)


def layernorm(x, g, b):
    M, N = x.shape
    tm = _choose_m_tile(M, 256)
    return pl.pallas_call(
        _ln_kernel,
        out_shape=jax.ShapeDtypeStruct((M, N), x.dtype),
        grid_spec=pltpu.PrefetchScalarGridSpec(
            num_scalar_prefetch=0, grid=(M // tm,),
            in_specs=[pl.BlockSpec((tm, N), lambda i: (i, 0)),
                      _spec((1, N), lambda i: (0, 0), single_buffer=True),
                      _spec((1, N), lambda i: (0, 0), single_buffer=True)],
            out_specs=pl.BlockSpec((tm, N), lambda i: (i, 0))),
        compiler_params=pltpu.CompilerParams(
            dimension_semantics=("parallel",),
            vmem_limit_bytes=VMEM_LIMIT),
    )(x, g.reshape(1, N), b.reshape(1, N))


# ------------- fused ProbSparse attention (all heads per batch step) ---------

def _sparse_attn_kernel(qr_ref, k_ref, v_ref, mtop_ref, o_ref, *,
                        n_heads, head_dim, scale):
    H, D = n_heads, head_dim
    L = k_ref.shape[1]
    u = qr_ref.shape[2]

    k32 = k_ref[0]                                   # (L, Hd) f32, lane-dense
    v32 = v_ref[0]                                   # (L, Hd) f32
    k_b = k32.astype(jnp.bfloat16)
    v_b = v32.astype(jnp.bfloat16)
    # initial context (mask_flag=False): mean of V for every query, all heads at once
    mean_v = jnp.mean(v32, axis=0, keepdims=True)    # (1, Hd)

    for h in range(H):                               # static unroll: all heads / grid step
        qh = qr_ref[0, h].astype(jnp.bfloat16)       # (u, D) top-u queries of head h
        kh = k_b[:, h * D:(h + 1) * D]               # (L, D) static lane slice
        vh = v_b[:, h * D:(h + 1) * D]

        # scores of the top-u queries vs all keys (bf16 MXU inputs, f32 accumulate)
        s = jax.lax.dot_general(qh, kh, (((1,), (1,)), ((), ())),
                                preferred_element_type=jnp.float32) * scale   # (u, L)
        m = jnp.max(s, axis=-1, keepdims=True)
        p = jnp.exp(s - m)
        p = p / jnp.sum(p, axis=-1, keepdims=True)   # exact softmax (matches torch)
        upd = jnp.dot(p.astype(jnp.bfloat16), vh,
                      preferred_element_type=jnp.float32)                     # (u, D)

        # sparse row update: scatter `upd` into rows M_top via a one-hot matmul;
        # top_k indices are unique so covered is exactly 0/1.  Kept in f32 (tiny cost)
        # so selected rows keep full precision.
        mt = mtop_ref[0, h]                                                   # (1, u)
        onehot = (jax.lax.broadcasted_iota(jnp.int32, (L, u), 0) == mt
                  ).astype(jnp.float32)                                       # (L, u)
        covered = jnp.sum(onehot, axis=-1, keepdims=True)                     # (L, 1)
        scattered = jnp.dot(onehot, upd, preferred_element_type=jnp.float32)  # (L, D)
        ctx_h = scattered + (1.0 - covered) * mean_v[:, h * D:(h + 1) * D]

        # per-head store into the lane-dense (1, L, Hd) output block (its HBM writeback
        # is one dense DMA; only these VMEM stores are D-wide).
        o_ref[0, :, h * D:(h + 1) * D] = ctx_h.astype(o_ref.dtype)


def fused_sparse_attention(q_red, k, v, m_top, scale):
    # q_red: (B, H, u, D), k/v: (B, L, Hd), m_top: (B, H, 1, u) int32 -> ctx (B, L, Hd)
    B, H, u, D = q_red.shape
    _, L, Hd = k.shape
    return pl.pallas_call(
        functools.partial(_sparse_attn_kernel, n_heads=H, head_dim=D, scale=scale),
        out_shape=jax.ShapeDtypeStruct((B, L, Hd), k.dtype),
        grid_spec=pltpu.PrefetchScalarGridSpec(
            num_scalar_prefetch=0, grid=(B,),
            in_specs=[pl.BlockSpec((1, H, u, D), lambda b: (b, 0, 0, 0)),
                      pl.BlockSpec((1, L, Hd), lambda b: (b, 0, 0)),
                      pl.BlockSpec((1, L, Hd), lambda b: (b, 0, 0)),
                      pl.BlockSpec((1, H, 1, u), lambda b: (b, 0, 0, 0))],
            out_specs=pl.BlockSpec((1, L, Hd), lambda b: (b, 0, 0))),
        compiler_params=pltpu.CompilerParams(
            dimension_semantics=("parallel",),
            vmem_limit_bytes=VMEM_LIMIT),
    )(q_red, k, v, m_top)


# ----------------------------- ProbAttention ---------------------------------

def prob_attention(q, k, v, n_heads, factor, sample_key):
    # q, k, v: (B, L, Hd); mask_flag=False (as constructed by AttentionLayer)
    B, L, Hd = q.shape
    H = n_heads
    D = Hd // H
    L_K = L_Q = L
    U_part = min(factor * int(np.ceil(np.log(L_K))), L_K)
    u = min(factor * int(np.ceil(np.log(L_Q))), L_Q)

    q4 = q.reshape(B, L, H, D)                          # free reshapes (no transpose)
    k4 = k.reshape(B, L, H, D)

    # sparsity measure from sampled keys: O(L * U_part * Hd), never forms (L, L) scores.
    # TODO(synk): fuse this gather into a Pallas kernel with index_sample in SMEM.
    index_sample = jax.random.randint(sample_key, (L_Q, U_part), 0, L_K)
    k_sample = k4[:, index_sample]                      # (B, L_Q, U_part, H, D)
    qk_sample = jnp.einsum('bqhd,bquhd->bhqu', q4, k_sample)
    M = qk_sample.max(axis=-1) - qk_sample.sum(axis=-1) / L_K        # (B, H, L_Q)
    M_top = jax.lax.top_k(M, u)[1]                                   # (B, H, u)

    # gather top-u queries per (b, h); only this small (B, u, Hd) tensor is transposed.
    idx = jnp.transpose(M_top, (0, 2, 1))[..., None]                 # (B, u, H, 1)
    q_red = jnp.take_along_axis(q4, idx, axis=1)                     # (B, u, H, D)
    q_red = jnp.transpose(q_red, (0, 2, 1, 3))                       # (B, H, u, D)

    ctx = fused_sparse_attention(
        q_red, k, v,
        M_top.reshape(B, H, 1, u).astype(jnp.int32),
        scale=1.0 / sqrt(D))
    return ctx                                                        # (B, L, Hd)


# ------------------------------ Encoder ---------------------------------------

def encoder_layer_fwd(x, p, n_heads, factor, sample_key):
    B, L, Hd = x.shape
    M = B * L
    x2 = x.reshape(M, Hd)

    # fused Q/K/V projection: one tiled matmul, x2 read from HBM once per column tile.
    qkv = matmul_bias(x2, p["w_qkv"], p["b_qkv"])                      # (M, 3*Hd)
    q, k, v = jnp.split(qkv, 3, axis=-1)
    q = q.reshape(B, L, Hd)
    k = k.reshape(B, L, Hd)
    v = v.reshape(B, L, Hd)

    ctx = prob_attention(q, k, v, n_heads, factor, sample_key)         # (B, L, Hd)

    # out-projection + residual + LayerNorm1, fused
    xn = proj_add_layernorm(x2, ctx.reshape(M, Hd), p["wo"], p["bo"],
                            p["ln1_g"], p["ln1_b"])
    # FFN (conv1 k=1 + ReLU + conv2 k=1) + residual + LayerNorm2, fused + inter-tiled
    out = ffn_add_layernorm(xn, p["w1"], p["b1"], p["w2"], p["b2"],
                            p["ln2_g"], p["ln2_b"])
    return out.reshape(B, L, Hd)


def encoder_fwd(x, params, n_heads, factor, key):
    keys = jax.random.split(key, len(params["layers"]))
    for p, kk in zip(params["layers"], keys):
        x = encoder_layer_fwd(x, p, n_heads, factor, kk)
    B, L, Hd = x.shape
    x = layernorm(x.reshape(B * L, Hd), params["norm_g"], params["norm_b"])
    return x.reshape(B, L, Hd)


def init_params(key, hidden, inter, n_layers):
    # matmul weights stored in bf16 (MXU-native inputs, half the HBM weight traffic);
    # biases / LayerNorm params stay f32.
    def w(k, shape, dtype=jnp.float32):
        return (0.1 * jax.random.normal(k, shape, jnp.float32)).astype(dtype)

    layers = []
    for _ in range(n_layers):
        key, *ks = jax.random.split(key, 9)
        layers.append(dict(
            w_qkv=w(ks[0], (hidden, 3 * hidden), jnp.bfloat16), b_qkv=w(ks[1], (3 * hidden,)),
            wo=w(ks[2], (hidden, hidden), jnp.bfloat16), bo=w(ks[3], (hidden,)),
            w1=w(ks[4], (hidden, inter), jnp.bfloat16), b1=w(ks[5], (inter,)),
            w2=w(ks[6], (inter, hidden), jnp.bfloat16), b2=w(ks[7], (hidden,)),
            ln1_g=jnp.ones((hidden,), jnp.float32), ln1_b=jnp.zeros((hidden,), jnp.float32),
            ln2_g=jnp.ones((hidden,), jnp.float32), ln2_b=jnp.zeros((hidden,), jnp.float32),
        ))
    return dict(layers=layers,
                norm_g=jnp.ones((hidden,), jnp.float32),
                norm_b=jnp.zeros((hidden,), jnp.float32))


if __name__ == "__main__":
    B, L = 2, 8
    HIDDEN, INTER, N_LAYERS, N_HEADS, FACTOR = 32, 64, 2, 4, 5

    root = jax.random.PRNGKey(0)
    k_param, k_x, k_sample = jax.random.split(root, 3)
    params = init_params(k_param, HIDDEN, INTER, N_LAYERS)
    x = jax.random.normal(k_x, (B, L, HIDDEN), jnp.float32)

    fwd = jax.jit(functools.partial(encoder_fwd, n_heads=N_HEADS,
                                    factor=FACTOR, key=k_sample))
    out = fwd(x, params)
    jax.block_until_ready(out)
    assert out.shape == (B, L, HIDDEN)
    assert bool(jnp.all(jnp.isfinite(out)))
    print("KERNEL_OK")
</pallas_src>

<mosaic_0001>
module attributes {stable_mosaic.version = 11 : i64} {
  func.func @_matmul_bias_kernel(%arg0: i32, %arg1: i32, %arg2: i32, %arg3: memref<16x32xf32, #tpu.memory_space<vmem>>, %arg4: memref<32x96xbf16, #tpu.memory_space<vmem>>, %arg5: memref<1x96xf32, #tpu.memory_space<vmem>>, %arg6: memref<16x96xf32, #tpu.memory_space<vmem>>, %arg7: memref<16x96xf32, #tpu.memory_space<vmem>>) attributes {dimension_semantics = [#tpu.dimension_semantics<parallel>, #tpu.dimension_semantics<parallel>, #tpu.dimension_semantics<arbitrary>], iteration_bounds = array<i64: 1, 1, 1>, scalar_prefetch = 0 : i64, scratch_operands = 1 : i64, tpu.core_type = #tpu.core_type<tc>, window_params = [{transform_indices = @transform_0, window_bounds = array<i64: 16, 32>}, {transform_indices = @transform_1, window_bounds = array<i64: 32, 96>}, {transform_indices = @transform_2, window_bounds = array<i64: 1, 96>}, {transform_indices = @transform_3, window_bounds = array<i64: 16, 96>}]} {
    %c0_i32 = arith.constant 0 : i32
    %0 = arith.cmpi eq, %arg2, %c0_i32 : i32
    %1 = arith.extui %0 : i1 to i32
    %c0_i32_0 = arith.constant 0 : i32
    %2 = arith.cmpi ne, %1, %c0_i32_0 : i32
    scf.if %2 {
      %cst_10 = arith.constant 0.000000e+00 : f32
      %13 = vector.broadcast %cst_10 : f32 to vector<16x96xf32>
      %c0_11 = arith.constant 0 : index
      %c0_12 = arith.constant 0 : index
      %14 = vector.load %arg7[%c0_11, %c0_12] : memref<16x96xf32, #tpu.memory_space<vmem>>, vector<16x96xf32>
      tpu.vector_store %arg7[%c0_11, %c0_12], %13 {strides = array<i32>} : memref<16x96xf32, #tpu.memory_space<vmem>>, vector<16x96xf32>,
    } else {
    }
    %c0 = arith.constant 0 : index
    %c0_1 = arith.constant 0 : index
    %3 = vector.load %arg7[%c0, %c0_1] : memref<16x96xf32, #tpu.memory_space<vmem>>, vector<16x96xf32>
    %c0_2 = arith.constant 0 : index
    %c0_3 = arith.constant 0 : index
    %4 = vector.load %arg3[%c0_2, %c0_3] : memref<16x32xf32, #tpu.memory_space<vmem>>, vector<16x32xf32>
    %5 = arith.truncf %4 : vector<16x32xf32> to vector<16x32xbf16>
    %c0_4 = arith.constant 0 : index
    %c0_5 = arith.constant 0 : index
    %6 = vector.load %arg4[%c0_4, %c0_5] : memref<32x96xbf16, #tpu.memory_space<vmem>>, vector<32x96xbf16>
    %cst = arith.constant dense<0.000000e+00> : vector<16x96xf32>
    %7 = tpu.matmul %5, %6, %cst {dimension_numbers = #tpu.dot_dimension_numbers<[1], [0], [0], [1], [0, 0, 1, 1], [], []>} : vector<16x32xbf16>, vector<32x96xbf16>, vector<16x96xf32> -> vector<16x96xf32>
    %8 = arith.addf %3, %7 : vector<16x96xf32>
    %c0_6 = arith.constant 0 : index
    %c0_7 = arith.constant 0 : index
    %9 = vector.load %arg7[%c0_6, %c0_7] : memref<16x96xf32, #tpu.memory_space<vmem>>, vector<16x96xf32>
    tpu.vector_store %arg7[%c0_6, %c0_7], %8 {strides = array<i32>} : memref<16x96xf32, #tpu.memory_space<vmem>>, vector<16x96xf32>,
    %c0_i32_8 = arith.constant 0 : i32
    %10 = arith.cmpi eq, %arg2, %c0_i32_8 : i32
    %11 = arith.extui %10 : i1 to i32
    %c0_i32_9 = arith.constant 0 : i32
    %12 = arith.cmpi ne, %11, %c0_i32_9 : i32
    scf.if %12 {
      %c0_10 = arith.constant 0 : index
      %c0_11 = arith.constant 0 : index
      %13 = vector.load %arg7[%c0_10, %c0_11] : memref<16x96xf32, #tpu.memory_space<vmem>>, vector<16x96xf32>
      %c0_12 = arith.constant 0 : index
      %c0_13 = arith.constant 0 : index
      %14 = vector.load %arg5[%c0_12, %c0_13] : memref<1x96xf32, #tpu.memory_space<vmem>>, vector<1x96xf32>
      %15 = vector.broadcast %14 : vector<1x96xf32> to vector<16x96xf32>
      %16 = arith.addf %13, %15 : vector<16x96xf32>
      %c0_14 = arith.constant 0 : index
      %c0_15 = arith.constant 0 : index
      %17 = vector.load %arg6[%c0_14, %c0_15] : memref<16x96xf32, #tpu.memory_space<vmem>>, vector<16x96xf32>
      tpu.vector_store %arg6[%c0_14, %c0_15], %16 {strides = array<i32>} : memref<16x96xf32, #tpu.memory_space<vmem>>, vector<16x96xf32>,
    } else {
    }
    return
  }
  func.func @transform_0(%arg0: i32, %arg1: i32, %arg2: i32) -> (i32, i32) {
    %c0_i32 = arith.constant 0 : i32
    return %arg0, %arg2 : i32, i32
  }
  func.func @transform_1(%arg0: i32, %arg1: i32, %arg2: i32) -> (i32, i32) {
    %c0_i32 = arith.constant 0 : i32
    return %arg2, %arg1 : i32, i32
  }
  func.func @transform_2(%arg0: i32, %arg1: i32, %arg2: i32) -> (i32, i32) {
    %c0_i32 = arith.constant 0 : i32
    %c0_i32_0 = arith.constant 0 : i32
    return %c0_i32, %arg1 : i32, i32
  }
  func.func @transform_3(%arg0: i32, %arg1: i32, %arg2: i32) -> (i32, i32) {
    %c0_i32 = arith.constant 0 : i32
    return %arg0, %arg1 : i32, i32
  }
}

module attributes {stable_mosaic.version = 11 : i64} {
  func.func @_sparse_attn_kernel(%arg0: i32, %arg1: memref<1x4x8x8xf32, #tpu.memory_space<vmem>>, %arg2: memref<1x8x32xf32, #tpu.memory_space<vmem>>, %arg3: memref<1x8x32xf32, #tpu.memory_space<vmem>>, %arg4: memref<1x4x1x8xi32, #tpu.memory_space<vmem>>, %arg5: memref<1x8x32xf32, #tpu.memory_space<vmem>>) attributes {dimension_semantics = [#tpu.dimension_semantics<parallel>], iteration_bounds = array<i64: 2>, scalar_prefetch = 0 : i64, scratch_operands = 0 : i64, tpu.core_type = #tpu.core_type<tc>, window_params = [{transform_indices = @transform_0, window_bounds = array<i64: 1, 4, 8, 8>}, {transform_indices = @transform_1, window_bounds = array<i64: 1, 8, 32>}, {transform_indices = @transform_2, window_bounds = array<i64: 1, 8, 32>}, {transform_indices = @transform_3, window_bounds = array<i64: 1, 4, 1, 8>}, {transform_indices = @transform_4, window_bounds = array<i64: 1, 8, 32>}]} {
    %c0 = arith.constant 0 : index
    %c0_0 = arith.constant 0 : index
    %c0_1 = arith.constant 0 : index
    %0 = vector.load %arg2[%c0, %c0_0, %c0_1] : memref<1x8x32xf32, #tpu.memory_space<vmem>>, vector<1x8x32xf32>
    %1 = vector.shape_cast %0 : vector<1x8x32xf32> to vector<8x32xf32>
    %c0_2 = arith.constant 0 : index
    %c0_3 = arith.constant 0 : index
    %c0_4 = arith.constant 0 : index
    %2 = vector.load %arg3[%c0_2, %c0_3, %c0_4] : memref<1x8x32xf32, #tpu.memory_space<vmem>>, vector<1x8x32xf32>
    %3 = vector.shape_cast %2 : vector<1x8x32xf32> to vector<8x32xf32>
    %4 = arith.truncf %1 : vector<8x32xf32> to vector<8x32xbf16>
    %5 = arith.truncf %3 : vector<8x32xf32> to vector<8x32xbf16>
    %cst = arith.constant dense<0.000000e+00> : vector<32xf32>
    %6 = vector.multi_reduction <add>, %3, %cst [0] : vector<8x32xf32> to vector<32xf32>
    %7 = vector.shape_cast %6 : vector<32xf32> to vector<1x32xf32>
    %cst_5 = arith.constant 8.000000e+00 : f32
    %8 = vector.broadcast %cst_5 : f32 to vector<1x32xf32>
    %9 = arith.divf %7, %8 : vector<1x32xf32>
    %c0_6 = arith.constant 0 : index
    %c0_7 = arith.constant 0 : index
    %c0_8 = arith.constant 0 : index
    %c0_9 = arith.constant 0 : index
    %10 = vector.load %arg1[%c0_6, %c0_7, %c0_8, %c0_9] : memref<1x4x8x8xf32, #tpu.memory_space<vmem>>, vector<1x1x8x8xf32>
    %11 = vector.shape_cast %10 : vector<1x1x8x8xf32> to vector<8x8xf32>
    %12 = arith.truncf %11 : vector<8x8xf32> to vector<8x8xbf16>
    %13 = vector.extract_strided_slice %4 {offsets = [0, 0], sizes = [8, 8], strides = [1, 1]} : vector<8x32xbf16> to vector<8x8xbf16>
    %14 = vector.extract_strided_slice %5 {offsets = [0, 0], sizes = [8, 8], strides = [1, 1]} : vector<8x32xbf16> to vector<8x8xbf16>
    %cst_10 = arith.constant dense<0.000000e+00> : vector<8x8xf32>
    %15 = tpu.matmul %12, %13, %cst_10 {dimension_numbers = #tpu.dot_dimension_numbers<[1], [1], [0], [0], [0, 0, 1, 0], [], []>} : vector<8x8xbf16>, vector<8x8xbf16>, vector<8x8xf32> -> vector<8x8xf32>
    %cst_11 = arith.constant 0.353553385 : f32
    %16 = vector.broadcast %cst_11 : f32 to vector<8x8xf32>
    %17 = arith.mulf %15, %16 : vector<8x8xf32>
    %cst_12 = arith.constant dense<0xFF800000> : vector<8xf32>
    %18 = vector.multi_reduction <maximumf>, %17, %cst_12 [1] : vector<8x8xf32> to vector<8xf32>
    %19 = vector.shape_cast %18 : vector<8xf32> to vector<8x1xf32>
    %20 = vector.broadcast %19 : vector<8x1xf32> to vector<8x8xf32>
    %21 = arith.subf %17, %20 : vector<8x8xf32>
    %22 = math.exp %21 : vector<8x8xf32>
    %cst_13 = arith.constant dense<0.000000e+00> : vector<8xf32>
    %23 = vector.multi_reduction <add>, %22, %cst_13 [1] : vector<8x8xf32> to vector<8xf32>
    %24 = vector.shape_cast %23 : vector<8xf32> to vector<8x1xf32>
    %25 = vector.broadcast %24 : vector<8x1xf32> to vector<8x8xf32>
    %26 = arith.divf %22, %25 : vector<8x8xf32>
    %27 = arith.truncf %26 : vector<8x8xf32> to vector<8x8xbf16>
    %cst_14 = arith.constant dense<0.000000e+00> : vector<8x8xf32>
    %28 = tpu.matmul %27, %14, %cst_14 {dimension_numbers = #tpu.dot_dimension_numbers<[1], [0], [0], [1], [0, 0, 1, 1], [], []>} : vector<8x8xbf16>, vector<8x8xbf16>, vector<8x8xf32> -> vector<8x8xf32>
    %c0_15 = arith.constant 0 : index
    %c0_16 = arith.constant 0 : index
    %c0_17 = arith.constant 0 : index
    %c0_18 = arith.constant 0 : index
    %29 = vector.load %arg4[%c0_15, %c0_16, %c0_17, %c0_18] : memref<1x4x1x8xi32, #tpu.memory_space<vmem>>, vector<1x1x1x8xi32>
    %30 = vector.shape_cast %29 : vector<1x1x1x8xi32> to vector<1x8xi32>
    %31 = tpu.iota {dimensions = array<i32: 0>} : vector<8x8xi32>
    %32 = vector.broadcast %30 : vector<1x8xi32> to vector<8x8xi32>
    %33 = arith.cmpi eq, %31, %32 : vector<8x8xi32>
    %34 = arith.extui %33 : vector<8x8xi1> to vector<8x8xi32>
    %35 = arith.sitofp %34 : vector<8x8xi32> to vector<8x8xf32>
    %cst_19 = arith.constant dense<0.000000e+00> : vector<8xf32>
    %36 = vector.multi_reduction <add>, %35, %cst_19 [1] : vector<8x8xf32> to vector<8xf32>
    %37 = vector.shape_cast %36 : vector<8xf32> to vector<8x1xf32>
    %cst_20 = arith.constant dense<0.000000e+00> : vector<8x8xf32>
    %38 = tpu.matmul %35, %28, %cst_20 {dimension_numbers = #tpu.dot_dimension_numbers<[1], [0], [0], [1], [0, 0, 1, 1], [], []>} : vector<8x8xf32>, vector<8x8xf32>, vector<8x8xf32> -> vector<8x8xf32>
    %cst_21 = arith.constant 1.000000e+00 : f32
    %39 = vector.broadcast %cst_21 : f32 to vector<8x1xf32>
    %40 = arith.subf %39, %37 : vector<8x1xf32>
    %41 = vector.extract_strided_slice %9 {offsets = [0, 0], sizes = [1, 8], strides = [1, 1]} : vector<1x32xf32> to vector<1x8xf32>
    %42 = vector.broadcast %40 : vector<8x1xf32> to vector<8x8xf32>
    %43 = vector.broadcast %41 : vector<1x8xf32> to vector<8x8xf32>
    %44 = arith.mulf %42, %43 : vector<8x8xf32>
    %45 = arith.addf %38, %44 : vector<8x8xf32>
    %c0_22 = arith.constant 0 : index
    %c0_23 = arith.constant 0 : index
    %c0_24 = arith.constant 0 : index
    %46 = vector.load %arg5[%c0_22, %c0_23, %c0_24] : memref<1x8x32xf32, #tpu.memory_space<vmem>>, vector<1x8x8xf32>
    %47 = vector.shape_cast %46 : vector<1x8x8xf32> to vector<8x8xf32>
    %48 = vector.shape_cast %45 : vector<8x8xf32> to vector<1x8x8xf32>
    tpu.vector_store %arg5[%c0_22, %c0_23, %c0_24], %48 {strides = array<i32>} : memref<1x8x32xf32, #tpu.memory_space<vmem>>, vector<1x8x8xf32>,
    %c0_25 = arith.constant 0 : index
    %c1 = arith.constant 1 : index
    %c0_26 = arith.constant 0 : index
    %c0_27 = arith.constant 0 : index
    %49 = vector.load %arg1[%c0_25, %c1, %c0_26, %c0_27] : memref<1x4x8x8xf32, #tpu.memory_space<vmem>>, vector<1x1x8x8xf32>
    %50 = vector.shape_cast %49 : vector<1x1x8x8xf32> to vector<8x8xf32>
    %51 = arith.truncf %50 : vector<8x8xf32> to vector<8x8xbf16>
    %52 = vector.extract_strided_slice %4 {offsets = [0, 8], sizes = [8, 8], strides = [1, 1]} : vector<8x32xbf16> to vector<8x8xbf16>
    %53 = vector.extract_strided_slice %5 {offsets = [0, 8], sizes = [8, 8], strides = [1, 1]} : vector<8x32xbf16> to vector<8x8xbf16>
    %cst_28 = arith.constant dense<0.000000e+00> : vector<8x8xf32>
    %54 = tpu.matmul %51, %52, %cst_28 {dimension_numbers = #tpu.dot_dimension_numbers<[1], [1], [0], [0], [0, 0, 1, 0], [], []>} : vector<8x8xbf16>, vector<8x8xbf16>, vector<8x8xf32> -> vector<8x8xf32>
    %cst_29 = arith.constant 0.353553385 : f32
    %55 = vector.broadcast %cst_29 : f32 to vector<8x8xf32>
    %56 = arith.mulf %54, %55 : vector<8x8xf32>
    %cst_30 = arith.constant dense<0xFF800000> : vector<8xf32>
    %57 = vector.multi_reduction <maximumf>, %56, %cst_30 [1] : vector<8x8xf32> to vector<8xf32>
    %58 = vector.shape_cast %57 : vector<8xf32> to vector<8x1xf32>
    %59 = vector.broadcast %58 : vector<8x1xf32> to vector<8x8xf32>
    %60 = arith.subf %56, %59 : vector<8x8xf32>
    %61 = math.exp %60 : vector<8x8xf32>
    %cst_31 = arith.constant dense<0.000000e+00> : vector<8xf32>
    %62 = vector.multi_reduction <add>, %61, %cst_31 [1] : vector<8x8xf32> to vector<8xf32>
    %63 = vector.shape_cast %62 : vector<8xf32> to vector<8x1xf32>
    %64 = vector.broadcast %63 : vector<8x1xf32> to vector<8x8xf32>
    %65 = arith.divf %61, %64 : vector<8x8xf32>
    %66 = arith.truncf %65 : vector<8x8xf32> to vector<8x8xbf16>
    %cst_32 = arith.constant dense<0.000000e+00> : vector<8x8xf32>
    %67 = tpu.matmul %66, %53, %cst_32 {dimension_numbers = #tpu.dot_dimension_numbers<[1], [0], [0], [1], [0, 0, 1, 1], [], []>} : vector<8x8xbf16>, vector<8x8xbf16>, vector<8x8xf32> -> vector<8x8xf32>
    %c0_33 = arith.constant 0 : index
    %c1_34 = arith.constant 1 : index
    %c0_35 = arith.constant 0 : index
    %c0_36 = arith.constant 0 : index
    %68 = vector.load %arg4[%c0_33, %c1_34, %c0_35, %c0_36] : memref<1x4x1x8xi32, #tpu.memory_space<vmem>>, vector<1x1x1x8xi32>
    %69 = vector.shape_cast %68 : vector<1x1x1x8xi32> to vector<1x8xi32>
    %70 = tpu.iota {dimensions = array<i32: 0>} : vector<8x8xi32>
    %71 = vector.broadcast %69 : vector<1x8xi32> to vector<8x8xi32>
    %72 = arith.cmpi eq, %70, %71 : vector<8x8xi32>
    %73 = arith.extui %72 : vector<8x8xi1> to vector<8x8xi32>
    %74 = arith.sitofp %73 : vector<8x8xi32> to vector<8x8xf32>
    %cst_37 = arith.constant dense<0.000000e+00> : vector<8xf32>
    %75 = vector.multi_reduction <add>, %74, %cst_37 [1] : vector<8x8xf32> to vector<8xf32>
    %76 = vector.shape_cast %75 : vector<8xf32> to vector<8x1xf32>
    %cst_38 = arith.constant dense<0.000000e+00> : vector<8x8xf32>
    %77 = tpu.matmul %74, %67, %cst_38 {dimension_numbers = #tpu.dot_dimension_numbers<[1], [0], [0], [1], [0, 0, 1, 1], [], []>} : vector<8x8xf32>, vector<8x8xf32>, vector<8x8xf32> -> vector<8x8xf32>
    %cst_39 = arith.constant 1.000000e+00 : f32
    %78 = vector.broadcast %cst_39 : f32 to vector<8x1xf32>
    %79 = arith.subf %78, %76 : vector<8x1xf32>
    %80 = vector.extract_strided_slice %9 {offsets = [0, 8], sizes = [1, 8], strides = [1, 1]} : vector<1x32xf32> to vector<1x8xf32>
    %81 = vector.broadcast %79 : vector<8x1xf32> to vector<8x8xf32>
    %82 = vector.broadcast %80 : vector<1x8xf32> to vector<8x8xf32>
    %83 = arith.mulf %81, %82 : vector<8x8xf32>
    %84 = arith.addf %77, %83 : vector<8x8xf32>
    %c0_40 = arith.constant 0 : index
    %c0_41 = arith.constant 0 : index
    %c8 = arith.constant 8 : index
    %85 = vector.load %arg5[%c0_40, %c0_41, %c8] : memref<1x8x32xf32, #tpu.memory_space<vmem>>, vector<1x8x8xf32>
    %86 = vector.shape_cast %85 : vector<1x8x8xf32> to vector<8x8xf32>
    %87 = vector.shape_cast %84 : vector<8x8xf32> to vector<1x8x8xf32>
    tpu.vector_store %arg5[%c0_40, %c0_41, %c8], %87 {strides = array<i32>} : memref<1x8x32xf32, #tpu.memory_space<vmem>>, vector<1x8x8xf32>,
    %c0_42 = arith.constant 0 : index
    %c2 = arith.constant 2 : index
    %c0_43 = arith.constant 0 : index
    %c0_44 = arith.constant 0 : index
    %88 = vector.load %arg1[%c0_42, %c2, %c0_43, %c0_44] : memref<1x4x8x8xf32, #tpu.memory_space<vmem>>, vector<1x1x8x8xf32>
    %89 = vector.shape_cast %88 : vector<1x1x8x8xf32> to vector<8x8xf32>
    %90 = arith.truncf %89 : vector<8x8xf32> to vector<8x8xbf16>
    %91 = vector.extract_strided_slice %4 {offsets = [0, 16], sizes = [8, 8], strides = [1, 1]} : vector<8x32xbf16> to vector<8x8xbf16>
    %92 = vector.extract_strided_slice %5 {offsets = [0, 16], sizes = [8, 8], strides = [1, 1]} : vector<8x32xbf16> to vector<8x8xbf16>
    %cst_45 = arith.constant dense<0.000000e+00> : vector<8x8xf32>
    %93 = tpu.matmul %90, %91, %cst_45 {dimension_numbers = #tpu.dot_dimension_numbers<[1], [1], [0], [0], [0, 0, 1, 0], [], []>} : vector<8x8xbf16>, vector<8x8xbf16>, vector<8x8xf32> -> vector<8x8xf32>
    %cst_46 = arith.constant 0.353553385 : f32
    %94 = vector.broadcast %cst_46 : f32 to vector<8x8xf32>
    %95 = arith.mulf %93, %94 : vector<8x8xf32>
    %cst_47 = arith.constant dense<0xFF800000> : vector<8xf32>
    %96 = vector.multi_reduction <maximumf>, %95, %cst_47 [1] : vector<8x8xf32> to vector<8xf32>
    %97 = vector.shape_cast %96 : vector<8xf32> to vector<8x1xf32>
    %98 = vector.broadcast %97 : vector<8x1xf32> to vector<8x8xf32>
    %99 = arith.subf %95, %98 : vector<8x8xf32>
    %100 = math.exp %99 : vector<8x8xf32>
    %cst_48 = arith.constant dense<0.000000e+00> : vector<8xf32>
    %101 = vector.multi_reduction <add>, %100, %cst_48 [1] : vector<8x8xf32> to vector<8xf32>
    %102 = vector.shape_cast %101 : vector<8xf32> to vector<8x1xf32>
    %103 = vector.broadcast %102 : vector<8x1xf32> to vector<8x8xf32>
    %104 = arith.divf %100, %103 : vector<8x8xf32>
    %105 = arith.truncf %104 : vector<8x8xf32> to vector<8x8xbf16>
    %cst_49 = arith.constant dense<0.000000e+00> : vector<8x8xf32>
    %106 = tpu.matmul %105, %92, %cst_49 {dimension_numbers = #tpu.dot_dimension_numbers<[1], [0], [0], [1], [0, 0, 1, 1], [], []>} : vector<8x8xbf16>, vector<8x8xbf16>, vector<8x8xf32> -> vector<8x8xf32>
    %c0_50 = arith.constant 0 : index
    %c2_51 = arith.constant 2 : index
    %c0_52 = arith.constant 0 : index
    %c0_53 = arith.constant 0 : index
    %107 = vector.load %arg4[%c0_50, %c2_51, %c0_52, %c0_53] : memref<1x4x1x8xi32, #tpu.memory_space<vmem>>, vector<1x1x1x8xi32>
    %108 = vector.shape_cast %107 : vector<1x1x1x8xi32> to vector<1x8xi32>
    %109 = tpu.iota {dimensions = array<i32: 0>} : vector<8x8xi32>
    %110 = vector.broadcast %108 : vector<1x8xi32> to vector<8x8xi32>
    %111 = arith.cmpi eq, %109, %110 : vector<8x8xi32>
    %112 = arith.extui %111 : vector<8x8xi1> to vector<8x8xi32>
    %113 = arith.sitofp %112 : vector<8x8xi32> to vector<8x8xf32>
    %cst_54 = arith.constant dense<0.000000e+00> : vector<8xf32>
    %114 = vector.multi_reduction <add>, %113, %cst_54 [1] : vector<8x8xf32> to vector<8xf32>
    %115 = vector.shape_cast %114 : vector<8xf32> to vector<8x1xf32>
    %cst_55 = arith.constant dense<0.000000e+00> : vector<8x8xf32>
    %116 = tpu.matmul %113, %106, %cst_55 {dimension_numbers = #tpu.dot_dimension_numbers<[1], [0], [0], [1], [0, 0, 1, 1], [], []>} : vector<8x8xf32>, vector<8x8xf32>, vector<8x8xf32> -> vector<8x8xf32>
    %cst_56 = arith.constant 1.000000e+00 : f32
    %117 = vector.broadcast %cst_56 : f32 to vector<8x1xf32>
    %118 = arith.subf %117, %115 : vector<8x1xf32>
    %119 = vector.extract_strided_slice %9 {offsets = [0, 16], sizes = [1, 8], strides = [1, 1]} : vector<1x32xf32> to vector<1x8xf32>
    %120 = vector.broadcast %118 : vector<8x1xf32> to vector<8x8xf32>
    %121 = vector.broadcast %119 : vector<1x8xf32> to vector<8x8xf32>
    %122 = arith.mulf %120, %121 : vector<8x8xf32>
    %123 = arith.addf %116, %122 : vector<8x8xf32>
    %c0_57 = arith.constant 0 : index
    %c0_58 = arith.constant 0 : index
    %c16 = arith.constant 16 : index
    %124 = vector.load %arg5[%c0_57, %c0_58, %c16] : memref<1x8x32xf32, #tpu.memory_space<vmem>>, vector<1x8x8xf32>
    %125 = vector.shape_cast %124 : vector<1x8x8xf32> to vector<8x8xf32>
    %126 = vector.shape_cast %123 : vector<8x8xf32> to vector<1x8x8xf32>
    tpu.vector_store %arg5[%c0_57, %c0_58, %c16], %126 {strides = array<i32>} : memref<1x8x32xf32, #tpu.memory_space<vmem>>, vector<1x8x8xf32>,
    %c0_59 = arith.constant 0 : index
    %c3 = arith.constant 3 : index
    %c0_60 = arith.constant 0 : index
    %c0_61 = arith.constant 0 : index
    %127 = vector.load %arg1[%c0_59, %c3, %c0_60, %c0_61] : memref<1x4x8x8xf32, #tpu.memory_space<vmem>>, vector<1x1x8x8xf32>
    %128 = vector.shape_cast %127 : vector<1x1x8x8xf32> to vector<8x8xf32>
    %129 = arith.truncf %128 : vector<8x8xf32> to vector<8x8xbf16>
    %130 = vector.extract_strided_slice %4 {offsets = [0, 24], sizes = [8, 8], strides = [1, 1]} : vector<8x32xbf16> to vector<8x8xbf16>
    %131 = vector.extract_strided_slice %5 {offsets = [0, 24], sizes = [8, 8], strides = [1, 1]} : vector<8x32xbf16> to vector<8x8xbf16>
    %cst_62 = arith.constant dense<0.000000e+00> : vector<8x8xf32>
    %132 = tpu.matmul %129, %130, %cst_62 {dimension_numbers = #tpu.dot_dimension_numbers<[1], [1], [0], [0], [0, 0, 1, 0], [], []>} : vector<8x8xbf16>, vector<8x8xbf16>, vector<8x8xf32> -> vector<8x8xf32>
    %cst_63 = arith.constant 0.353553385 : f32
    %133 = vector.broadcast %cst_63 : f32 to vector<8x8xf32>
    %134 = arith.mulf %132, %133 : vector<8x8xf32>
    %cst_64 = arith.constant dense<0xFF800000> : vector<8xf32>
    %135 = vector.multi_reduction <maximumf>, %134, %cst_64 [1] : vector<8x8xf32> to vector<8xf32>
    %136 = vector.shape_cast %135 : vector<8xf32> to vector<8x1xf32>
    %137 = vector.broadcast %136 : vector<8x1xf32> to vector<8x8xf32>
    %138 = arith.subf %134, %137 : vector<8x8xf32>
    %139 = math.exp %138 : vector<8x8xf32>
    %cst_65 = arith.constant dense<0.000000e+00> : vector<8xf32>
    %140 = vector.multi_reduction <add>, %139, %cst_65 [1] : vector<8x8xf32> to vector<8xf32>
    %141 = vector.shape_cast %140 : vector<8xf32> to vector<8x1xf32>
    %142 = vector.broadcast %141 : vector<8x1xf32> to vector<8x8xf32>
    %143 = arith.divf %139, %142 : vector<8x8xf32>
    %144 = arith.truncf %143 : vector<8x8xf32> to vector<8x8xbf16>
    %cst_66 = arith.constant dense<0.000000e+00> : vector<8x8xf32>
    %145 = tpu.matmul %144, %131, %cst_66 {dimension_numbers = #tpu.dot_dimension_numbers<[1], [0], [0], [1], [0, 0, 1, 1], [], []>} : vector<8x8xbf16>, vector<8x8xbf16>, vector<8x8xf32> -> vector<8x8xf32>
    %c0_67 = arith.constant 0 : index
    %c3_68 = arith.constant 3 : index
    %c0_69 = arith.constant 0 : index
    %c0_70 = arith.constant 0 : index
    %146 = vector.load %arg4[%c0_67, %c3_68, %c0_69, %c0_70] : memref<1x4x1x8xi32, #tpu.memory_space<vmem>>, vector<1x1x1x8xi32>
    %147 = vector.shape_cast %146 : vector<1x1x1x8xi32> to vector<1x8xi32>
    %148 = tpu.iota {dimensions = array<i32: 0>} : vector<8x8xi32>
    %149 = vector.broadcast %147 : vector<1x8xi32> to vector<8x8xi32>
    %150 = arith.cmpi eq, %148, %149 : vector<8x8xi32>
    %151 = arith.extui %150 : vector<8x8xi1> to vector<8x8xi32>
    %152 = arith.sitofp %151 : vector<8x8xi32> to vector<8x8xf32>
    %cst_71 = arith.constant dense<0.000000e+00> : vector<8xf32>
    %153 = vector.multi_reduction <add>, %152, %cst_71 [1] : vector<8x8xf32> to vector<8xf32>
    %154 = vector.shape_cast %153 : vector<8xf32> to vector<8x1xf32>
    %cst_72 = arith.constant dense<0.000000e+00> : vector<8x8xf32>
    %155 = tpu.matmul %152, %145, %cst_72 {dimension_numbers = #tpu.dot_dimension_numbers<[1], [0], [0], [1], [0, 0, 1, 1], [], []>} : vector<8x8xf32>, vector<8x8xf32>, vector<8x8xf32> -> vector<8x8xf32>
    %cst_73 = arith.constant 1.000000e+00 : f32
    %156 = vector.broadcast %cst_73 : f32 to vector<8x1xf32>
    %157 = arith.subf %156, %154 : vector<8x1xf32>
    %158 = vector.extract_strided_slice %9 {offsets = [0, 24], sizes = [1, 8], strides = [1, 1]} : vector<1x32xf32> to vector<1x8xf32>
    %159 = vector.broadcast %157 : vector<8x1xf32> to vector<8x8xf32>
    %160 = vector.broadcast %158 : vector<1x8xf32> to vector<8x8xf32>
    %161 = arith.mulf %159, %160 : vector<8x8xf32>
    %162 = arith.addf %155, %161 : vector<8x8xf32>
    %c0_74 = arith.constant 0 : index
    %c0_75 = arith.constant 0 : index
    %c24 = arith.constant 24 : index
    %163 = vector.load %arg5[%c0_74, %c0_75, %c24] : memref<1x8x32xf32, #tpu.memory_space<vmem>>, vector<1x8x8xf32>
    %164 = vector.shape_cast %163 : vector<1x8x8xf32> to vector<8x8xf32>
    %165 = vector.shape_cast %162 : vector<8x8xf32> to vector<1x8x8xf32>
    tpu.vector_store %arg5[%c0_74, %c0_75, %c24], %165 {strides = array<i32>} : memref<1x8x32xf32, #tpu.memory_space<vmem>>, vector<1x8x8xf32>,
    return
  }
  func.func @transform_0(%arg0: i32) -> (i32, i32, i32, i32) {
    %c0_i32 = arith.constant 0 : i32
    %c0_i32_0 = arith.constant 0 : i32
    %c0_i32_1 = arith.constant 0 : i32
    %c0_i32_2 = arith.constant 0 : i32
    return %arg0, %c0_i32, %c0_i32_0, %c0_i32_1 : i32, i32, i32, i32
  }
  func.func @transform_1(%arg0: i32) -> (i32, i32, i32) {
    %c0_i32 = arith.constant 0 : i32
    %c0_i32_0 = arith.constant 0 : i32
    %c0_i32_1 = arith.constant 0 : i32
    return %arg0, %c0_i32, %c0_i32_0 : i32, i32, i32
  }
  func.func @transform_2(%arg0: i32) -> (i32, i32, i32) {
    %c0_i32 = arith.constant 0 : i32
    %c0_i32_0 = arith.constant 0 : i32
    %c0_i32_1 = arith.constant 0 : i32
    return %arg0, %c0_i32, %c0_i32_0 : i32, i32, i32
  }
  func.func @transform_3(%arg0: i32) -> (i32, i32, i32, i32) {
    %c0_i32 = arith.constant 0 : i32
    %c0_i32_0 = arith.constant 0 : i32
    %c0_i32_1 = arith.constant 0 : i32
    %c0_i32_2 = arith.constant 0 : i32
    return %arg0, %c0_i32, %c0_i32_0, %c0_i32_1 : i32, i32, i32, i32
  }
  func.func @transform_4(%arg0: i32) -> (i32, i32, i32) {
    %c0_i32 = arith.constant 0 : i32
    %c0_i32_0 = arith.constant 0 : i32
    %c0_i32_1 = arith.constant 0 : i32
    return %arg0, %c0_i32, %c0_i32_0 : i32, i32, i32
  }
}

module attributes {stable_mosaic.version = 11 : i64} {
  func.func @_proj_add_ln_kernel(%arg0: i32, %arg1: memref<16x32xf32, #tpu.memory_space<vmem>>, %arg2: memref<16x32xf32, #tpu.memory_space<vmem>>, %arg3: memref<32x32xbf16, #tpu.memory_space<vmem>>, %arg4: memref<1x32xf32, #tpu.memory_space<vmem>>, %arg5: memref<1x32xf32, #tpu.memory_space<vmem>>, %arg6: memref<1x32xf32, #tpu.memory_space<vmem>>, %arg7: memref<16x32xf32, #tpu.memory_space<vmem>>) attributes {dimension_semantics = [#tpu.dimension_semantics<parallel>], iteration_bounds = array<i64: 1>, scalar_prefetch = 0 : i64, scratch_operands = 0 : i64, tpu.core_type = #tpu.core_type<tc>, window_params = [{transform_indices = @transform_0, window_bounds = array<i64: 16, 32>}, {transform_indices = @transform_1, window_bounds = array<i64: 16, 32>}, {pipeline_mode = #tpu.pipeline_mode<synchronous>, transform_indices = @transform_2, window_bounds = array<i64: 32, 32>}, {pipeline_mode = #tpu.pipeline_mode<synchronous>, transform_indices = @transform_3, window_bounds = array<i64: 1, 32>}, {pipeline_mode = #tpu.pipeline_mode<synchronous>, transform_indices = @transform_4, window_bounds = array<i64: 1, 32>}, {pipeline_mode = #tpu.pipeline_mode<synchronous>, transform_indices = @transform_5, window_bounds = array<i64: 1, 32>}, {transform_indices = @transform_6, window_bounds = array<i64: 16, 32>}]} {
    %c0 = arith.constant 0 : index
    %c0_0 = arith.constant 0 : index
    %0 = vector.load %arg2[%c0, %c0_0] : memref<16x32xf32, #tpu.memory_space<vmem>>, vector<16x32xf32>
    %1 = arith.truncf %0 : vector<16x32xf32> to vector<16x32xbf16>
    %c0_1 = arith.constant 0 : index
    %c0_2 = arith.constant 0 : index
    %2 = vector.load %arg3[%c0_1, %c0_2] : memref<32x32xbf16, #tpu.memory_space<vmem>>, vector<32x32xbf16>
    %cst = arith.constant dense<0.000000e+00> : vector<16x32xf32>
    %3 = tpu.matmul %1, %2, %cst {dimension_numbers = #tpu.dot_dimension_numbers<[1], [0], [0], [1], [0, 0, 1, 1], [], []>} : vector<16x32xbf16>, vector<32x32xbf16>, vector<16x32xf32> -> vector<16x32xf32>
    %c0_3 = arith.constant 0 : index
    %c0_4 = arith.constant 0 : index
    %4 = vector.load %arg4[%c0_3, %c0_4] : memref<1x32xf32, #tpu.memory_space<vmem>>, vector<1x32xf32>
    %5 = vector.broadcast %4 : vector<1x32xf32> to vector<16x32xf32>
    %6 = arith.addf %3, %5 : vector<16x32xf32>
    %c0_5 = arith.constant 0 : index
    %c0_6 = arith.constant 0 : index
    %7 = vector.load %arg1[%c0_5, %c0_6] : memref<16x32xf32, #tpu.memory_space<vmem>>, vector<16x32xf32>
    %8 = arith.addf %7, %6 : vector<16x32xf32>
    %cst_7 = arith.constant dense<0.000000e+00> : vector<16xf32>
    %9 = vector.multi_reduction <add>, %8, %cst_7 [1] : vector<16x32xf32> to vector<16xf32>
    %10 = vector.shape_cast %9 : vector<16xf32> to vector<16x1xf32>
    %cst_8 = arith.constant 3.200000e+01 : f32
    %11 = vector.broadcast %cst_8 : f32 to vector<16x1xf32>
    %12 = arith.divf %10, %11 : vector<16x1xf32>
    %13 = vector.broadcast %12 : vector<16x1xf32> to vector<16x32xf32>
    %14 = arith.subf %8, %13 : vector<16x32xf32>
    %15 = arith.mulf %14, %14 : vector<16x32xf32>
    %cst_9 = arith.constant dense<0.000000e+00> : vector<16xf32>
    %16 = vector.multi_reduction <add>, %15, %cst_9 [1] : vector<16x32xf32> to vector<16xf32>
    %17 = vector.shape_cast %16 : vector<16xf32> to vector<16x1xf32>
    %cst_10 = arith.constant 3.200000e+01 : f32
    %18 = vector.broadcast %cst_10 : f32 to vector<16x1xf32>
    %19 = arith.divf %17, %18 : vector<16x1xf32>
    %20 = vector.broadcast %12 : vector<16x1xf32> to vector<16x32xf32>
    %21 = arith.subf %8, %20 : vector<16x32xf32>
    %cst_11 = arith.constant 9.99999974E-6 : f32
    %22 = vector.broadcast %cst_11 : f32 to vector<16x1xf32>
    %23 = arith.addf %19, %22 : vector<16x1xf32>
    %24 = math.rsqrt %23 : vector<16x1xf32>
    %25 = vector.broadcast %24 : vector<16x1xf32> to vector<16x32xf32>
    %26 = arith.mulf %21, %25 : vector<16x32xf32>
    %c0_12 = arith.constant 0 : index
    %c0_13 = arith.constant 0 : index
    %27 = vector.load %arg5[%c0_12, %c0_13] : memref<1x32xf32, #tpu.memory_space<vmem>>, vector<1x32xf32>
    %28 = vector.broadcast %27 : vector<1x32xf32> to vector<16x32xf32>
    %29 = arith.mulf %26, %28 : vector<16x32xf32>
    %c0_14 = arith.constant 0 : index
    %c0_15 = arith.constant 0 : index
    %30 = vector.load %arg6[%c0_14, %c0_15] : memref<1x32xf32, #tpu.memory_space<vmem>>, vector<1x32xf32>
    %31 = vector.broadcast %30 : vector<1x32xf32> to vector<16x32xf32>
    %32 = arith.addf %29, %31 : vector<16x32xf32>
    %c0_16 = arith.constant 0 : index
    %c0_17 = arith.constant 0 : index
    %33 = vector.load %arg7[%c0_16, %c0_17] : memref<16x32xf32, #tpu.memory_space<vmem>>, vector<16x32xf32>
    tpu.vector_store %arg7[%c0_16, %c0_17], %32 {strides = array<i32>} : memref<16x32xf32, #tpu.memory_space<vmem>>, vector<16x32xf32>,
    return
  }
  func.func @transform_0(%arg0: i32) -> (i32, i32) {
    %c0_i32 = arith.constant 0 : i32
    %c0_i32_0 = arith.constant 0 : i32
    return %arg0, %c0_i32 : i32, i32
  }
  func.func @transform_1(%arg0: i32) -> (i32, i32) {
    %c0_i32 = arith.constant 0 : i32
    %c0_i32_0 = arith.constant 0 : i32
    return %arg0, %c0_i32 : i32, i32
  }
  func.func @transform_2(%arg0: i32) -> (i32, i32) {
    %c0_i32 = arith.constant 0 : i32
    %c0_i32_0 = arith.constant 0 : i32
    %c0_i32_1 = arith.constant 0 : i32
    return %c0_i32, %c0_i32_0 : i32, i32
  }
  func.func @transform_3(%arg0: i32) -> (i32, i32) {
    %c0_i32 = arith.constant 0 : i32
    %c0_i32_0 = arith.constant 0 : i32
    %c0_i32_1 = arith.constant 0 : i32
    return %c0_i32, %c0_i32_0 : i32, i32
  }
  func.func @transform_4(%arg0: i32) -> (i32, i32) {
    %c0_i32 = arith.constant 0 : i32
    %c0_i32_0 = arith.constant 0 : i32
    %c0_i32_1 = arith.constant 0 : i32
    return %c0_i32, %c0_i32_0 : i32, i32
  }
  func.func @transform_5(%arg0: i32) -> (i32, i32) {
    %c0_i32 = arith.constant 0 : i32
    %c0_i32_0 = arith.constant 0 : i32
    %c0_i32_1 = arith.constant 0 : i32
    return %c0_i32, %c0_i32_0 : i32, i32
  }
  func.func @transform_6(%arg0: i32) -> (i32, i32) {
    %c0_i32 = arith.constant 0 : i32
    %c0_i32_0 = arith.constant 0 : i32
    return %arg0, %c0_i32 : i32, i32
  }
}

module attributes {stable_mosaic.version = 11 : i64} {
  func.func @_ffn_add_ln_kernel(%arg0: i32, %arg1: i32, %arg2: memref<16x32xf32, #tpu.memory_space<vmem>>, %arg3: memref<32x64xbf16, #tpu.memory_space<vmem>>, %arg4: memref<1x64xf32, #tpu.memory_space<vmem>>, %arg5: memref<64x32xbf16, #tpu.memory_space<vmem>>, %arg6: memref<1x32xf32, #tpu.memory_space<vmem>>, %arg7: memref<1x32xf32, #tpu.memory_space<vmem>>, %arg8: memref<1x32xf32, #tpu.memory_space<vmem>>, %arg9: memref<16x32xf32, #tpu.memory_space<vmem>>, %arg10: memref<16x32xf32, #tpu.memory_space<vmem>>) attributes {dimension_semantics = [#tpu.dimension_semantics<parallel>, #tpu.dimension_semantics<arbitrary>], iteration_bounds = array<i64: 1, 1>, scalar_prefetch = 0 : i64, scratch_operands = 1 : i64, tpu.core_type = #tpu.core_type<tc>, window_params = [{transform_indices = @transform_0, window_bounds = array<i64: 16, 32>}, {transform_indices = @transform_1, window_bounds = array<i64: 32, 64>}, {transform_indices = @transform_2, window_bounds = array<i64: 1, 64>}, {transform_indices = @transform_3, window_bounds = array<i64: 64, 32>}, {pipeline_mode = #tpu.pipeline_mode<synchronous>, transform_indices = @transform_4, window_bounds = array<i64: 1, 32>}, {pipeline_mode = #tpu.pipeline_mode<synchronous>, transform_indices = @transform_5, window_bounds = array<i64: 1, 32>}, {pipeline_mode = #tpu.pipeline_mode<synchronous>, transform_indices = @transform_6, window_bounds = array<i64: 1, 32>}, {transform_indices = @transform_7, window_bounds = array<i64: 16, 32>}]} {
    %c0_i32 = arith.constant 0 : i32
    %0 = arith.cmpi eq, %arg1, %c0_i32 : i32
    %1 = arith.extui %0 : i1 to i32
    %c0_i32_0 = arith.constant 0 : i32
    %2 = arith.cmpi ne, %1, %c0_i32_0 : i32
    scf.if %2 {
      %cst_16 = arith.constant 0.000000e+00 : f32
      %21 = vector.broadcast %cst_16 : f32 to vector<16x32xf32>
      %c0_17 = arith.constant 0 : index
      %c0_18 = arith.constant 0 : index
      %22 = vector.load %arg10[%c0_17, %c0_18] : memref<16x32xf32, #tpu.memory_space<vmem>>, vector<16x32xf32>
      tpu.vector_store %arg10[%c0_17, %c0_18], %21 {strides = array<i32>} : memref<16x32xf32, #tpu.memory_space<vmem>>, vector<16x32xf32>,
    } else {
    }
    %c0 = arith.constant 0 : index
    %c0_1 = arith.constant 0 : index
    %3 = vector.load %arg2[%c0, %c0_1] : memref<16x32xf32, #tpu.memory_space<vmem>>, vector<16x32xf32>
    %4 = arith.truncf %3 : vector<16x32xf32> to vector<16x32xbf16>
    %c0_2 = arith.constant 0 : index
    %c0_3 = arith.constant 0 : index
    %5 = vector.load %arg3[%c0_2, %c0_3] : memref<32x64xbf16, #tpu.memory_space<vmem>>, vector<32x64xbf16>
    %cst = arith.constant dense<0.000000e+00> : vector<16x64xf32>
    %6 = tpu.matmul %4, %5, %cst {dimension_numbers = #tpu.dot_dimension_numbers<[1], [0], [0], [1], [0, 0, 1, 1], [], []>} : vector<16x32xbf16>, vector<32x64xbf16>, vector<16x64xf32> -> vector<16x64xf32>
    %c0_4 = arith.constant 0 : index
    %c0_5 = arith.constant 0 : index
    %7 = vector.load %arg4[%c0_4, %c0_5] : memref<1x64xf32, #tpu.memory_space<vmem>>, vector<1x64xf32>
    %8 = vector.broadcast %7 : vector<1x64xf32> to vector<16x64xf32>
    %9 = arith.addf %6, %8 : vector<16x64xf32>
    %cst_6 = arith.constant 0.000000e+00 : f32
    %10 = vector.broadcast %cst_6 : f32 to vector<16x64xf32>
    %11 = arith.maximumf %9, %10 : vector<16x64xf32>
    %c0_7 = arith.constant 0 : index
    %c0_8 = arith.constant 0 : index
    %12 = vector.load %arg10[%c0_7, %c0_8] : memref<16x32xf32, #tpu.memory_space<vmem>>, vector<16x32xf32>
    %13 = arith.truncf %11 : vector<16x64xf32> to vector<16x64xbf16>
    %c0_9 = arith.constant 0 : index
    %c0_10 = arith.constant 0 : index
    %14 = vector.load %arg5[%c0_9, %c0_10] : memref<64x32xbf16, #tpu.memory_space<vmem>>, vector<64x32xbf16>
    %cst_11 = arith.constant dense<0.000000e+00> : vector<16x32xf32>
    %15 = tpu.matmul %13, %14, %cst_11 {dimension_numbers = #tpu.dot_dimension_numbers<[1], [0], [0], [1], [0, 0, 1, 1], [], []>} : vector<16x64xbf16>, vector<64x32xbf16>, vector<16x32xf32> -> vector<16x32xf32>
    %16 = arith.addf %12, %15 : vector<16x32xf32>
    %c0_12 = arith.constant 0 : index
    %c0_13 = arith.constant 0 : index
    %17 = vector.load %arg10[%c0_12, %c0_13] : memref<16x32xf32, #tpu.memory_space<vmem>>, vector<16x32xf32>
    tpu.vector_store %arg10[%c0_12, %c0_13], %16 {strides = array<i32>} : memref<16x32xf32, #tpu.memory_space<vmem>>, vector<16x32xf32>,
    %c0_i32_14 = arith.constant 0 : i32
    %18 = arith.cmpi eq, %arg1, %c0_i32_14 : i32
    %19 = arith.extui %18 : i1 to i32
    %c0_i32_15 = arith.constant 0 : i32
    %20 = arith.cmpi ne, %19, %c0_i32_15 : i32
    scf.if %20 {
      %c0_16 = arith.constant 0 : index
      %c0_17 = arith.constant 0 : index
      %21 = vector.load %arg10[%c0_16, %c0_17] : memref<16x32xf32, #tpu.memory_space<vmem>>, vector<16x32xf32>
      %22 = arith.addf %3, %21 : vector<16x32xf32>
      %c0_18 = arith.constant 0 : index
      %c0_19 = arith.constant 0 : index
      %23 = vector.load %arg6[%c0_18, %c0_19] : memref<1x32xf32, #tpu.memory_space<vmem>>, vector<1x32xf32>
      %24 = vector.broadcast %23 : vector<1x32xf32> to vector<16x32xf32>
      %25 = arith.addf %22, %24 : vector<16x32xf32>
      %cst_20 = arith.constant dense<0.000000e+00> : vector<16xf32>
      %26 = vector.multi_reduction <add>, %25, %cst_20 [1] : vector<16x32xf32> to vector<16xf32>
      %27 = vector.shape_cast %26 : vector<16xf32> to vector<16x1xf32>
      %cst_21 = arith.constant 3.200000e+01 : f32
      %28 = vector.broadcast %cst_21 : f32 to vector<16x1xf32>
      %29 = arith.divf %27, %28 : vector<16x1xf32>
      %30 = vector.broadcast %29 : vector<16x1xf32> to vector<16x32xf32>
      %31 = arith.subf %25, %30 : vector<16x32xf32>
      %32 = arith.mulf %31, %31 : vector<16x32xf32>
      %cst_22 = arith.constant dense<0.000000e+00> : vector<16xf32>
      %33 = vector.multi_reduction <add>, %32, %cst_22 [1] : vector<16x32xf32> to vector<16xf32>
      %34 = vector.shape_cast %33 : vector<16xf32> to vector<16x1xf32>
      %cst_23 = arith.constant 3.200000e+01 : f32
      %35 = vector.broadcast %cst_23 : f32 to vector<16x1xf32>
      %36 = arith.divf %34, %35 : vector<16x1xf32>
      %37 = vector.broadcast %29 : vector<16x1xf32> to vector<16x32xf32>
      %38 = arith.subf %25, %37 : vector<16x32xf32>
      %cst_24 = arith.constant 9.99999974E-6 : f32
      %39 = vector.broadcast %cst_24 : f32 to vector<16x1xf32>
      %40 = arith.addf %36, %39 : vector<16x1xf32>
      %41 = math.rsqrt %40 : vector<16x1xf32>
      %42 = vector.broadcast %41 : vector<16x1xf32> to vector<16x32xf32>
      %43 = arith.mulf %38, %42 : vector<16x32xf32>
      %c0_25 = arith.constant 0 : index
      %c0_26 = arith.constant 0 : index
      %44 = vector.load %arg7[%c0_25, %c0_26] : memref<1x32xf32, #tpu.memory_space<vmem>>, vector<1x32xf32>
      %45 = vector.broadcast %44 : vector<1x32xf32> to vector<16x32xf32>
      %46 = arith.mulf %43, %45 : vector<16x32xf32>
      %c0_27 = arith.constant 0 : index
      %c0_28 = arith.constant 0 : index
      %47 = vector.load %arg8[%c0_27, %c0_28] : memref<1x32xf32, #tpu.memory_space<vmem>>, vector<1x32xf32>
      %48 = vector.broadcast %47 : vector<1x32xf32> to vector<16x32xf32>
      %49 = arith.addf %46, %48 : vector<16x32xf32>
      %c0_29 = arith.constant 0 : index
      %c0_30 = arith.constant 0 : index
      %50 = vector.load %arg9[%c0_29, %c0_30] : memref<16x32xf32, #tpu.memory_space<vmem>>, vector<16x32xf32>
      tpu.vector_store %arg9[%c0_29, %c0_30], %49 {strides = array<i32>} : memref<16x32xf32, #tpu.memory_space<vmem>>, vector<16x32xf32>,
    } else {
    }
    return
  }
  func.func @transform_0(%arg0: i32, %arg1: i32) -> (i32, i32) {
    %c0_i32 = arith.constant 0 : i32
    %c0_i32_0 = arith.constant 0 : i32
    return %arg0, %c0_i32 : i32, i32
  }
  func.func @transform_1(%arg0: i32, %arg1: i32) -> (i32, i32) {
    %c0_i32 = arith.constant 0 : i32
    %c0_i32_0 = arith.constant 0 : i32
    return %c0_i32, %arg1 : i32, i32
  }
  func.func @transform_2(%arg0: i32, %arg1: i32) -> (i32, i32) {
    %c0_i32 = arith.constant 0 : i32
    %c0_i32_0 = arith.constant 0 : i32
    return %c0_i32, %arg1 : i32, i32
  }
  func.func @transform_3(%arg0: i32, %arg1: i32) -> (i32, i32) {
    %c0_i32 = arith.constant 0 : i32
    %c0_i32_0 = arith.constant 0 : i32
    return %arg1, %c0_i32 : i32, i32
  }
  func.func @transform_4(%arg0: i32, %arg1: i32) -> (i32, i32) {
    %c0_i32 = arith.constant 0 : i32
    %c0_i32_0 = arith.constant 0 : i32
    %c0_i32_1 = arith.constant 0 : i32
    return %c0_i32, %c0_i32_0 : i32, i32
  }
  func.func @transform_5(%arg0: i32, %arg1: i32) -> (i32, i32) {
    %c0_i32 = arith.constant 0 : i32
    %c0_i32_0 = arith.constant 0 : i32
    %c0_i32_1 = arith.constant 0 : i32
    return %c0_i32, %c0_i32_0 : i32, i32
  }
  func.func @transform_6(%arg0: i32, %arg1: i32) -> (i32, i32) {
    %c0_i32 = arith.constant 0 : i32
    %c0_i32_0 = arith.constant 0 : i32
    %c0_i32_1 = arith.constant 0 : i32
    return %c0_i32, %c0_i32_0 : i32, i32
  }
  func.func @transform_7(%arg0: i32, %arg1: i32) -> (i32, i32) {
    %c0_i32 = arith.constant 0 : i32
    %c0_i32_0 = arith.constant 0 : i32
    return %arg0, %c0_i32 : i32, i32
  }
}

module attributes {stable_mosaic.version = 11 : i64} {
  func.func @_ln_kernel(%arg0: i32, %arg1: memref<16x32xf32, #tpu.memory_space<vmem>>, %arg2: memref<1x32xf32, #tpu.memory_space<vmem>>, %arg3: memref<1x32xf32, #tpu.memory_space<vmem>>, %arg4: memref<16x32xf32, #tpu.memory_space<vmem>>) attributes {dimension_semantics = [#tpu.dimension_semantics<parallel>], iteration_bounds = array<i64: 1>, scalar_prefetch = 0 : i64, scratch_operands = 0 : i64, tpu.core_type = #tpu.core_type<tc>, window_params = [{transform_indices = @transform_0, window_bounds = array<i64: 16, 32>}, {pipeline_mode = #tpu.pipeline_mode<synchronous>, transform_indices = @transform_1, window_bounds = array<i64: 1, 32>}, {pipeline_mode = #tpu.pipeline_mode<synchronous>, transform_indices = @transform_2, window_bounds = array<i64: 1, 32>}, {transform_indices = @transform_3, window_bounds = array<i64: 16, 32>}]} {
    %c0 = arith.constant 0 : index
    %c0_0 = arith.constant 0 : index
    %0 = vector.load %arg1[%c0, %c0_0] : memref<16x32xf32, #tpu.memory_space<vmem>>, vector<16x32xf32>
    %cst = arith.constant dense<0.000000e+00> : vector<16xf32>
    %1 = vector.multi_reduction <add>, %0, %cst [1] : vector<16x32xf32> to vector<16xf32>
    %2 = vector.shape_cast %1 : vector<16xf32> to vector<16x1xf32>
    %cst_1 = arith.constant 3.200000e+01 : f32
    %3 = vector.broadcast %cst_1 : f32 to vector<16x1xf32>
    %4 = arith.divf %2, %3 : vector<16x1xf32>
    %5 = vector.broadcast %4 : vector<16x1xf32> to vector<16x32xf32>
    %6 = arith.subf %0, %5 : vector<16x32xf32>
    %7 = arith.mulf %6, %6 : vector<16x32xf32>
    %cst_2 = arith.constant dense<0.000000e+00> : vector<16xf32>
    %8 = vector.multi_reduction <add>, %7, %cst_2 [1] : vector<16x32xf32> to vector<16xf32>
    %9 = vector.shape_cast %8 : vector<16xf32> to vector<16x1xf32>
    %cst_3 = arith.constant 3.200000e+01 : f32
    %10 = vector.broadcast %cst_3 : f32 to vector<16x1xf32>
    %11 = arith.divf %9, %10 : vector<16x1xf32>
    %12 = vector.broadcast %4 : vector<16x1xf32> to vector<16x32xf32>
    %13 = arith.subf %0, %12 : vector<16x32xf32>
    %cst_4 = arith.constant 9.99999974E-6 : f32
    %14 = vector.broadcast %cst_4 : f32 to vector<16x1xf32>
    %15 = arith.addf %11, %14 : vector<16x1xf32>
    %16 = math.rsqrt %15 : vector<16x1xf32>
    %17 = vector.broadcast %16 : vector<16x1xf32> to vector<16x32xf32>
    %18 = arith.mulf %13, %17 : vector<16x32xf32>
    %c0_5 = arith.constant 0 : index
    %c0_6 = arith.constant 0 : index
    %19 = vector.load %arg2[%c0_5, %c0_6] : memref<1x32xf32, #tpu.memory_space<vmem>>, vector<1x32xf32>
    %20 = vector.broadcast %19 : vector<1x32xf32> to vector<16x32xf32>
    %21 = arith.mulf %18, %20 : vector<16x32xf32>
    %c0_7 = arith.constant 0 : index
    %c0_8 = arith.constant 0 : index
    %22 = vector.load %arg3[%c0_7, %c0_8] : memref<1x32xf32, #tpu.memory_space<vmem>>, vector<1x32xf32>
    %23 = vector.broadcast %22 : vector<1x32xf32> to vector<16x32xf32>
    %24 = arith.addf %21, %23 : vector<16x32xf32>
    %c0_9 = arith.constant 0 : index
    %c0_10 = arith.constant 0 : index
    %25 = vector.load %arg4[%c0_9, %c0_10] : memref<16x32xf32, #tpu.memory_space<vmem>>, vector<16x32xf32>
    tpu.vector_store %arg4[%c0_9, %c0_10], %24 {strides = array<i32>} : memref<16x32xf32, #tpu.memory_space<vmem>>, vector<16x32xf32>,
    return
  }
  func.func @transform_0(%arg0: i32) -> (i32, i32) {
    %c0_i32 = arith.constant 0 : i32
    %c0_i32_0 = arith.constant 0 : i32
    return %arg0, %c0_i32 : i32, i32
  }
  func.func @transform_1(%arg0: i32) -> (i32, i32) {
    %c0_i32 = arith.constant 0 : i32
    %c0_i32_0 = arith.constant 0 : i32
    %c0_i32_1 = arith.constant 0 : i32
    return %c0_i32, %c0_i32_0 : i32, i32
  }
  func.func @transform_2(%arg0: i32) -> (i32, i32) {
    %c0_i32 = arith.constant 0 : i32
    %c0_i32_0 = arith.constant 0 : i32
    %c0_i32_1 = arith.constant 0 : i32
    return %c0_i32, %c0_i32_0 : i32, i32
  }
  func.func @transform_3(%arg0: i32) -> (i32, i32) {
    %c0_i32 = arith.constant 0 : i32
    %c0_i32_0 = arith.constant 0 : i32
    return %arg0, %c0_i32 : i32, i32
  }
}

</mosaic_0001>

<llo_original>
// kernel: encoder_fwd.9
$region0: #{encoder_fwd.9}
  #allocation0 [shape = 'u32[]', space=smem, size = 0x4, offset = 0x4, fixed_abs, tag = 'smem constant byte address 0x4 - core index']
  #allocation1 [shape = 'u32[144,128]{1,0:T(1,128)}', space=vmem, size = 0x12000, scoped, tag = 'internal scratch']
  #allocation2 [shape = 'f32[16,96]{1,0:T(8,128)}', space=vmem, size = 0x2000, scoped, tag = 'scratch operand']
  %s0 = inlined_call_operand.vmem [shape: f32[16,32], index: 0, kind: input, shape index: {}]
  %s1 = inlined_call_operand.vmem [shape: bf16[32,96], index: 1, kind: input, shape index: {}]
  %s2 = inlined_call_operand.vmem [shape: f32[1,96], index: 2, kind: input, shape index: {}]
  %s3 = inlined_call_operand.vmem [shape: f32[16,96], index: 3, kind: output, shape index: {}]
  %s4 = sld [smem:[#allocation0]]
  $region30: #{encoder_fwd.9} parent=0
    _
  %s6 = ssub.s32 1, %s4
  %s7 = scalar_select 0, %s6, %s4
  // Predicated region
  $region2: #{encoder_fwd.9} parent=0 // pred_check
    _
  $region3: #{encoder_fwd.9} parent=0 // pred_check_branch
    %9 = sbr.rel (0) target = $region5
  $region4: #{encoder_fwd.9} parent=0 // pred_region
    _
  $region5: #{encoder_fwd.9} parent=0 // pred_fallthru
    _
  // Predicated region
  $region6: #{encoder_fwd.9} parent=0 // pred_check
    _
  $region7: #{encoder_fwd.9} parent=0 // pred_check_branch
    %11 = sbr.rel (0) target = $region9
  $region8: #{encoder_fwd.9} parent=0 // pred_region
    _
  $region9: #{encoder_fwd.9} parent=0 // pred_fallthru
    _
  // Predicated region
  $region10: #{encoder_fwd.9} parent=0 // pred_check
    _
  $region11: #{encoder_fwd.9} parent=0 // pred_check_branch
    %13 = sbr.rel (0) target = $region13
  $region12: #{encoder_fwd.9} parent=0 // pred_region
    _
  $region13: #{encoder_fwd.9} parent=0 // pred_fallthru
    _
  %p15 = scmp.eq.s32.totalorder 0, 0
  // Predicated region
  $region14: #{encoder_fwd.9} parent=0 // pred_check
    %p16 = pneg %p15
  $region15: #{encoder_fwd.9} parent=0 // pred_check_branch
    %18 = sbr.rel (%p16) target = $region17
  $region16: #{encoder_fwd.9} parent=0 // pred_region
    %vm19 = vcmask 785408
    %20 = vst.msk [vmem:[#allocation2] sm:$0xff] %vm19, 0.0
    %21 = vst.msk [vmem:[#allocation2 + $0x8] sm:$0xff] %vm19, 0.0
  $region17: #{encoder_fwd.9} parent=0 // pred_fallthru
    _
  %v22 = vld [vmem:[#allocation2] sm:$0xff]
  %v23 = vld [vmem:[#allocation2 + $0x8] sm:$0xff]
  %v24 = vld [vmem:[%s0] sm:$0xff]
  %v25 = vld [vmem:[%s0 + $0x8] sm:$0xff]
  %v26 = vpack.c.bf16 %v25, %v24
  %v27 = vld [vmem:[%s1] sm:$0xf]
  %v28 = vld [vmem:[%s1 + $0x4] sm:$0xf]
  %v29 = vld [vmem:[%s1 + $0x8] sm:$0xf]
  %v30 = vld [vmem:[%s1 + $0xc] sm:$0xf]
  %v35 = vunpack.c.l.b16 %v27
  %v36 = vunpack.c.l.b16 %v28
  %v37 = vunpack.c.l.b16 %v29
  %v38 = vunpack.c.l.b16 %v30
  %v39 = vpack.c.b16 %v36, %v35
  %v40 = vpack.c.b16 %v38, %v37
  %vm43 = vcmask 261120
  %v45 = vsel %vm43, %v26, 0
  %47 = vmatprep.subr.bf16.mxu0 0
  %48 = vmatpush1.bf16.msra.mxu0 %v39
  %49 = vmatprep.subr.bf16.mxu0 0
  %50 = vmatpush1.bf16.msra.mxu0 %v40
  %51 = vmatprep.subr.bf16.mxu0 0
  %52 = vmatpush1.bf16.msra.mxu0 0
  %53 = vmatprep.subr.bf16.mxu0 0
  %54 = vmatpush1.bf16.msra.mxu0 0
  %55 = vmatprep.subr.bf16.mxu0 0
  %56 = vmatpush1.bf16.msra.mxu0 0
  %57 = vmatprep.subr.bf16.mxu0 0
  %58 = vmatpush1.bf16.msra.mxu0 0
  %59 = vmatprep.subr.bf16.mxu0 0
  %60 = vmatpush1.bf16.msra.mxu0 0
  %61 = vmatprep.subr.bf16.mxu0 0
  %62 = vmatpush1.bf16.msra.mxu0 0
  %63 = vmatprep.subr.bf16.mxu0 0
  %64 = vmatpush1.bf16.msra.mxu0 0
  %65 = vmatprep.subr.bf16.mxu0 0
  %66 = vmatpush1.bf16.msra.mxu0 0
  %67 = vmatprep.subr.bf16.mxu0 0
  %68 = vmatpush1.bf16.msra.mxu0 0
  %69 = vmatprep.subr.bf16.mxu0 0
  %70 = vmatpush1.bf16.msra.mxu0 0
  %71 = vmatprep.subr.bf16.mxu0 0
  %72 = vmatpush1.bf16.msra.mxu0 0
  %73 = vmatprep.subr.bf16.mxu0 0
  %74 = vmatpush1.bf16.msra.mxu0 0
  %75 = vmatprep.subr.bf16.mxu0 0
  %76 = vmatpush1.bf16.msra.mxu0 0
  %77 = vmatprep.subr.bf16.mxu0 0
  %78 = vmatpush1.bf16.msra.mxu0 0
  %79 = vmatprep.mubr.bf16.mxu0 0
  %80 = vmatmul.mubr.bf16.gmra.mrb[0].mxu0 %v45
  %v81 = vpop.f32.mrb[0].mxu0
  %v82 = vadd.f32 0.0, %v81
  %v83 = vpop.f32.mrb[0].mxu0
  %v84 = vpop.f32.mrb[0].mxu0
  %v85 = vadd.f32 0.0, %v84
  %v86 = vpop.f32.mrb[0].mxu0
  %87 = vdwg.mxu0
  %v88 = vadd.f32 %v22, %v82
  %v89 = vadd.f32 %v23, %v85
  %vm90 = vcmask 785408
  %91 = vst.msk [vmem:[#allocation2] sm:$0xff] %vm90, %v88
  %92 = vst.msk [vmem:[#allocation2 + $0x8] sm:$0xff] %vm90, %v89
  // Predicated region
  $region18: #{encoder_fwd.9} parent=0 // pred_check
    %p93 = pneg %p15
  $region19: #{encoder_fwd.9} parent=0 // pred_check_branch
    %95 = sbr.rel (%p93) target = $region21
  $region20: #{encoder_fwd.9} parent=0 // pred_region
    %v96 = vld [vmem:[#allocation2] sm:$0xff]
    %v97 = vld [vmem:[#allocation2 + $0x8] sm:$0xff]
    %v98 = vld [vmem:[%s2] sm:$0x1]
    %v100 = vlaneseq
    %v101 = vshrl.u32 %v100, 7
    %v102 = vsub.s32 0, %v101
    %v103 = vrot.slane %v98, %v102
    %v105 = vadd.f32 %v96, %v103
    %v106 = vadd.f32 %v97, %v103
    %107 = vst.msk [vmem:[%s3] sm:$0xff] %vm90, %v105
    %108 = vst.msk [vmem:[%s3 + $0x8] sm:$0xff] %vm90, %v106
  $region21: #{encoder_fwd.9} parent=0 // pred_fallthru
    _
  // Predicated region
  $region22: #{encoder_fwd.9} parent=0 // pred_check
    _
  $region23: #{encoder_fwd.9} parent=0 // pred_check_branch
    %110 = sbr.rel (0) target = $region25
  $region24: #{encoder_fwd.9} parent=0 // pred_region
    _
  $region25: #{encoder_fwd.9} parent=0 // pred_fallthru
    _
  // Predicated region
  $region26: #{encoder_fwd.9} parent=0 // pred_check
    _
  $region27: #{encoder_fwd.9} parent=0 // pred_check_branch
    %112 = sbr.rel (0) target = $region29
  $region28: #{encoder_fwd.9} parent=0 // pred_region
    _
  $region29: #{encoder_fwd.9} parent=0 // pred_fallthru
    _

// kernel: encoder_fwd.11
$region0: #{encoder_fwd.11}
  #allocation0 [shape = 'u32[]', space=smem, size = 0x4, offset = 0x4, fixed_abs, tag = 'smem constant byte address 0x4 - core index']
  #allocation1 [shape = 'u32[144,128]{1,0:T(1,128)}', space=vmem, size = 0x12000, scoped, tag = 'internal scratch']
  %s0 = inlined_call_operand.vmem [shape: f32[16,32], index: 0, kind: input, shape index: {}]
  %s1 = inlined_call_operand.vmem [shape: f32[16,32], index: 1, kind: input, shape index: {}]
  %s2 = inlined_call_operand.vmem [shape: bf16[32,32], index: 2, kind: input, shape index: {}]
  %s3 = inlined_call_operand.vmem [shape: f32[1,32], index: 3, kind: input, shape index: {}]
  %s4 = inlined_call_operand.vmem [shape: f32[1,32], index: 4, kind: input, shape index: {}]
  %s5 = inlined_call_operand.vmem [shape: f32[1,32], index: 5, kind: input, shape index: {}]
  %s6 = inlined_call_operand.vmem [shape: f32[16,32], index: 6, kind: output, shape index: {}]
  %s7 = sld [smem:[#allocation0]]
  $region34: #{encoder_fwd.11} parent=0
    _
  %s9 = ssub.s32 1, %s7
  %s10 = scalar_select 0, %s9, %s7
  // Predicated region
  $region2: #{encoder_fwd.11} parent=0 // pred_check
    _
  $region3: #{encoder_fwd.11} parent=0 // pred_check_branch
    %12 = sbr.rel (0) target = $region5
  $region4: #{encoder_fwd.11} parent=0 // pred_region
    _
  $region5: #{encoder_fwd.11} parent=0 // pred_fallthru
    _
  // Predicated region
  $region6: #{encoder_fwd.11} parent=0 // pred_check
    _
  $region7: #{encoder_fwd.11} parent=0 // pred_check_branch
    %14 = sbr.rel (0) target = $region9
  $region8: #{encoder_fwd.11} parent=0 // pred_region
    _
  $region9: #{encoder_fwd.11} parent=0 // pred_fallthru
    _
  // Predicated region
  $region10: #{encoder_fwd.11} parent=0 // pred_check
    _
  $region11: #{encoder_fwd.11} parent=0 // pred_check_branch
    %16 = sbr.rel (0) target = $region13
  $region12: #{encoder_fwd.11} parent=0 // pred_region
    _
  $region13: #{encoder_fwd.11} parent=0 // pred_fallthru
    _
  // Predicated region
  $region14: #{encoder_fwd.11} parent=0 // pred_check
    _
  $region15: #{encoder_fwd.11} parent=0 // pred_check_branch
    %18 = sbr.rel (0) target = $region17
  $region16: #{encoder_fwd.11} parent=0 // pred_region
    _
  $region17: #{encoder_fwd.11} parent=0 // pred_fallthru
    _
  // Predicated region
  $region18: #{encoder_fwd.11} parent=0 // pred_check
    _
  $region19: #{encoder_fwd.11} parent=0 // pred_check_branch
    %20 = sbr.rel (0) target = $region21
  $region20: #{encoder_fwd.11} parent=0 // pred_region
    _
  $region21: #{encoder_fwd.11} parent=0 // pred_fallthru
    _
  // Predicated region
  $region22: #{encoder_fwd.11} parent=0 // pred_check
    _
  $region23: #{encoder_fwd.11} parent=0 // pred_check_branch
    %22 = sbr.rel (0) target = $region25
  $region24: #{encoder_fwd.11} parent=0 // pred_region
    _
  $region25: #{encoder_fwd.11} parent=0 // pred_fallthru
    _
  %v24 = vld [vmem:[%s1] sm:$0xff]
  %v25 = vld [vmem:[%s1 + $0x8] sm:$0xff]
  %v26 = vpack.c.bf16 %v25, %v24
  %v27 = vld [vmem:[%s2] sm:$0xf]
  %v28 = vld [vmem:[%s2 + $0x4] sm:$0xf]
  %v29 = vld [vmem:[%s2 + $0x8] sm:$0xf]
  %v30 = vld [vmem:[%s2 + $0xc] sm:$0xf]
  %v31 = vld [vmem:[%s3] sm:$0x1]
  %v33 = vlaneseq
  %v34 = vshrl.u32 %v33, 7
  %v35 = vsub.s32 0, %v34
  %v36 = vrot.slane %v31, %v35
  %v42 = vunpack.c.l.b16 %v27
  %v43 = vunpack.c.l.b16 %v28
  %v44 = vunpack.c.l.b16 %v29
  %v45 = vunpack.c.l.b16 %v30
  %v46 = vpack.c.b16 %v43, %v42
  %v47 = vpack.c.b16 %v45, %v44
  %vm50 = vcmask 261120
  %v52 = vsel %vm50, %v26, 0
  %54 = vmatprep.subr.bf16.mxu0 0
  %55 = vmatpush1.bf16.msra.mxu0 %v46
  %56 = vmatprep.subr.bf16.mxu0 0
  %57 = vmatpush1.bf16.msra.mxu0 %v47
  %58 = vmatprep.subr.bf16.mxu0 0
  %59 = vmatpush1.bf16.msra.mxu0 0
  %60 = vmatprep.subr.bf16.mxu0 0
  %61 = vmatpush1.bf16.msra.mxu0 0
  %62 = vmatprep.subr.bf16.mxu0 0
  %63 = vmatpush1.bf16.msra.mxu0 0
  %64 = vmatprep.subr.bf16.mxu0 0
  %65 = vmatpush1.bf16.msra.mxu0 0
  %66 = vmatprep.subr.bf16.mxu0 0
  %67 = vmatpush1.bf16.msra.mxu0 0
  %68 = vmatprep.subr.bf16.mxu0 0
  %69 = vmatpush1.bf16.msra.mxu0 0
  %70 = vmatprep.subr.bf16.mxu0 0
  %71 = vmatpush1.bf16.msra.mxu0 0
  %72 = vmatprep.subr.bf16.mxu0 0
  %73 = vmatpush1.bf16.msra.mxu0 0
  %74 = vmatprep.subr.bf16.mxu0 0
  %75 = vmatpush1.bf16.msra.mxu0 0
  %76 = vmatprep.subr.bf16.mxu0 0
  %77 = vmatpush1.bf16.msra.mxu0 0
  %78 = vmatprep.subr.bf16.mxu0 0
  %79 = vmatpush1.bf16.msra.mxu0 0
  %80 = vmatprep.subr.bf16.mxu0 0
  %81 = vmatpush1.bf16.msra.mxu0 0
  %82 = vmatprep.subr.bf16.mxu0 0
  %83 = vmatpush1.bf16.msra.mxu0 0
  %84 = vmatprep.subr.bf16.mxu0 0
  %85 = vmatpush1.bf16.msra.mxu0 0
  %86 = vmatprep.mubr.bf16.mxu0 0
  %87 = vmatmul.mubr.bf16.gmra.mrb[0].mxu0 %v52
  %v88 = vpop.f32.mrb[0].mxu0
  %v89 = vadd.f32 %v36, %v88
  %v90 = vpop.f32.mrb[0].mxu0
  %v91 = vpop.f32.mrb[0].mxu0
  %v92 = vadd.f32 %v36, %v91
  %v93 = vpop.f32.mrb[0].mxu0
  %94 = vdwg.mxu0
  %v95 = vld [vmem:[%s0] sm:$0xff]
  %v96 = vld [vmem:[%s0 + $0x8] sm:$0xff]
  %v97 = vadd.f32 %v95, %v89
  %v98 = vadd.f32 %v96, %v92
  %v99 = vsel %vm50, %v97, 0.0
  %100 = vadd.xlane.f32.xlu0 %v99
  %v101 = vpop.xlane.xlu0 %100
  %v102 = vsel %vm50, %v98, 0.0
  %103 = vadd.xlane.f32.xlu0 %v102
  %v104 = vpop.xlane.xlu0 %103
  %v105 = vrcp.pop 32.0
  %v106 = vmul.f32 %v101, %v105
  %v107 = vmul.f32 %v104, %v105
  %v108 = vsub.f32 %v97, %v106
  %v109 = vsub.f32 %v98, %v107
  %v110 = vmul.f32 %v108, %v108
  %v111 = vmul.f32 %v109, %v109
  %v112 = vsel %vm50, %v110, 0.0
  %113 = vadd.xlane.f32.xlu0 %v112
  %v114 = vpop.xlane.xlu0 %113
  %v115 = vsel %vm50, %v111, 0.0
  %116 = vadd.xlane.f32.xlu0 %v115
  %v117 = vpop.xlane.xlu0 %116
  %v118 = vmul.f32 %v114, %v105
  %v119 = vmul.f32 %v117, %v105
  %v120 = vadd.f32 %v118, 1e-05
  %v121 = vadd.f32 %v119, 1e-05
  %v122 = vrsqrt.pop %v120
  %v123 = vrsqrt.pop %v121
  %v124 = vmul.f32 %v108, %v122
  %v125 = vmul.f32 %v109, %v123
  %v126 = vld [vmem:[%s4] sm:$0x1]
  %v128 = vlaneseq
  %v129 = vshrl.u32 %v128, 7
  %v130 = vsub.s32 0, %v129
  %v131 = vrot.slane %v126, %v130
  %v133 = vmul.f32 %v124, %v131
  %v134 = vmul.f32 %v125, %v131
  %v135 = vld [vmem:[%s5] sm:$0x1]
  %v137 = vlaneseq
  %v138 = vshrl.u32 %v137, 7
  %v139 = vsub.s32 0, %v138
  %v140 = vrot.slane %v135, %v139
  %v142 = vadd.f32 %v133, %v140
  %v143 = vadd.f32 %v134, %v140
  %144 = vst.msk [vmem:[%s6] sm:$0xff] %vm50, %v142
  %145 = vst.msk [vmem:[%s6 + $0x8] sm:$0xff] %vm50, %v143
  // Predicated region
  $region26: #{encoder_fwd.11} parent=0 // pred_check
    _
  $region27: #{encoder_fwd.11} parent=0 // pred_check_branch
    %147 = sbr.rel (0) target = $region29
  $region28: #{encoder_fwd.11} parent=0 // pred_region
    _
  $region29: #{encoder_fwd.11} parent=0 // pred_fallthru
    _
  // Predicated region
  $region30: #{encoder_fwd.11} parent=0 // pred_check
    _
  $region31: #{encoder_fwd.11} parent=0 // pred_check_branch
    %149 = sbr.rel (0) target = $region33
  $region32: #{encoder_fwd.11} parent=0 // pred_region
    _
  $region33: #{encoder_fwd.11} parent=0 // pred_fallthru
    _

// kernel: encoder_fwd.10
$region0: #{encoder_fwd.10}
  #allocation0 [shape = 'u32[]', space=smem, size = 0x4, offset = 0x4, fixed_abs, tag = 'smem constant byte address 0x4 - core index']
  #allocation1 [shape = 'u32[144,128]{1,0:T(1,128)}', space=vmem, size = 0x12000, scoped, tag = 'internal scratch']
  %s0 = inlined_call_operand.vmem [shape: f32[2,4,8,8], index: 0, kind: input, shape index: {}]
  %s1 = inlined_call_operand.vmem [shape: f32[2,8,32], index: 1, kind: input, shape index: {}]
  %s2 = inlined_call_operand.vmem [shape: f32[2,8,32], index: 2, kind: input, shape index: {}]
  %s3 = inlined_call_operand.vmem [shape: s32[2,4,1,8], index: 3, kind: input, shape index: {}]
  %s4 = inlined_call_operand.vmem [shape: f32[2,8,32], index: 4, kind: output, shape index: {}]
  %s5 = sld [smem:[#allocation0]]
  $region49: #{encoder_fwd.10} parent=0
    _
  %s7 = ssub.s32 1, %s5
  %s8 = scalar_select 0, %s7, %s5
  loop: start=0, step=1, limit=4
  $region2: #{encoder_fwd.10} parent=0 // loop_pre_header
    _
  $region3: #{encoder_fwd.10} parent=0 // loop_header
    %s10 = sphi 0, %s14
    %p11 = scmp.ge.s32.totalorder %s10, 4
    %s20 = sphi 0, %s22
    %s23 = sphi 0, %s20
    %s24 = sphi 0, %s23
    %s40 = sphi 0, %s24
    %s46 = sphi 0, %s48
    %s49 = sphi 0, %s46
    %s50 = sphi 0, %s49
    %s66 = sphi 0, %s50
    %s72 = sphi 0, %s74
    %s75 = sphi 0, %s72
    %s76 = sphi 0, %s75
    %s92 = sphi 0, %s76
    %s98 = sphi 0, %s100
    %s101 = sphi 0, %s98
    %s102 = sphi 0, %s101
    %s118 = sphi 0, %s102
    %s124 = sphi 0, %s126
    %s127 = sphi 0, %s124
    %s128 = sphi 0, %s127
    %s144 = sphi 0, %s128
  $region4: #{encoder_fwd.10} parent=0 // loop_header_branch
    %13 = sbr.rel (%p11) target = $region8
  $region5: #{encoder_fwd.10} parent=0 // loop_body
    %s15 = ssub.s32 %s10, 1
    %s16 = ssub.s32 %s10, 2
    %s17 = sadd.s32 %s10, 1
    %s18 = ssub.s32 %s10, %s17
    %p19 = scmp.eq.s32.totalorder %s18, 0
    %s21 = sadd.s32 %s20, 1
    %s22 = scalar_select %p19, %s20, %s21
    %p25 = pneg %p19
    %p26 = scmp.eq.s32.totalorder %s10, 1
    %p27 = por %p25, %p26
    %p28 = scmp.ne.s32.totalorder %s20, %s23
    %p29 = scmp.eq.s32.totalorder %s10, 0
    %p30 = por %p28, %p29
    %p31 = scmp.ne.s32.totalorder %s20, %s23
    %p32 = scmp.eq.s32.totalorder %s15, 1
    %p33 = por %p31, %p32
    %p34 = scmp.ne.s32.totalorder %s23, %s24
    %p35 = scmp.eq.s32.totalorder %s15, 0
    %p36 = por %p34, %p35
    %p37 = scmp.ne.s32.totalorder %s23, %s24
    %p38 = scmp.eq.s32.totalorder %s16, 1
    %p39 = por %p37, %p38
    %p41 = scmp.ne.s32.totalorder %s24, %s40
    %p42 = scmp.eq.s32.totalorder %s16, 0
    %p43 = por %p41, %p42
    %s44 = ssub.s32 %s10, %s17
    %p45 = scmp.eq.s32.totalorder %s44, 0
    %s47 = sadd.s32 %s46, 1
    %s48 = scalar_select %p45, %s46, %s47
    %p51 = pneg %p45
    %p52 = scmp.eq.s32.totalorder %s10, 1
    %p53 = por %p51, %p52
    %p54 = scmp.ne.s32.totalorder %s46, %s49
    %p55 = scmp.eq.s32.totalorder %s10, 0
    %p56 = por %p54, %p55
    %p57 = scmp.ne.s32.totalorder %s46, %s49
    %p58 = scmp.eq.s32.totalorder %s15, 1
    %p59 = por %p57, %p58
    %p60 = scmp.ne.s32.totalorder %s49, %s50
    %p61 = scmp.eq.s32.totalorder %s15, 0
    %p62 = por %p60, %p61
    %p63 = scmp.ne.s32.totalorder %s49, %s50
    %p64 = scmp.eq.s32.totalorder %s16, 1
    %p65 = por %p63, %p64
    %p67 = scmp.ne.s32.totalorder %s50, %s66
    %p68 = scmp.eq.s32.totalorder %s16, 0
    %p69 = por %p67, %p68
    %s70 = ssub.s32 %s10, %s17
    %p71 = scmp.eq.s32.totalorder %s70, 0
    %s73 = sadd.s32 %s72, 1
    %s74 = scalar_select %p71, %s72, %s73
    %p77 = pneg %p71
    %p78 = scmp.eq.s32.totalorder %s10, 1
    %p79 = por %p77, %p78
    %p80 = scmp.ne.s32.totalorder %s72, %s75
    %p81 = scmp.eq.s32.totalorder %s10, 0
    %p82 = por %p80, %p81
    %p83 = scmp.ne.s32.totalorder %s72, %s75
    %p84 = scmp.eq.s32.totalorder %s15, 1
    %p85 = por %p83, %p84
    %p86 = scmp.ne.s32.totalorder %s75, %s76
    %p87 = scmp.eq.s32.totalorder %s15, 0
    %p88 = por %p86, %p87
    %p89 = scmp.ne.s32.totalorder %s75, %s76
    %p90 = scmp.eq.s32.totalorder %s16, 1
    %p91 = por %p89, %p90
    %p93 = scmp.ne.s32.totalorder %s76, %s92
    %p94 = scmp.eq.s32.totalorder %s16, 0
    %p95 = por %p93, %p94
    %s96 = ssub.s32 %s10, %s17
    %p97 = scmp.eq.s32.totalorder %s96, 0
    %s99 = sadd.s32 %s98, 1
    %s100 = scalar_select %p97, %s98, %s99
    %p103 = pneg %p97
    %p104 = scmp.eq.s32.totalorder %s10, 1
    %p105 = por %p103, %p104
    %p106 = scmp.ne.s32.totalorder %s98, %s101
    %p107 = scmp.eq.s32.totalorder %s10, 0
    %p108 = por %p106, %p107
    %p109 = scmp.ne.s32.totalorder %s98, %s101
    %p110 = scmp.eq.s32.totalorder %s15, 1
    %p111 = por %p109, %p110
    %p112 = scmp.ne.s32.totalorder %s101, %s102
    %p113 = scmp.eq.s32.totalorder %s15, 0
    %p114 = por %p112, %p113
    %p115 = scmp.ne.s32.totalorder %s101, %s102
    %p116 = scmp.eq.s32.totalorder %s16, 1
    %p117 = por %p115, %p116
    %p119 = scmp.ne.s32.totalorder %s102, %s118
    %p120 = scmp.eq.s32.totalorder %s16, 0
    %p121 = por %p119, %p120
    %s122 = ssub.s32 %s10, %s17
    %p123 = scmp.eq.s32.totalorder %s122, 0
    %s125 = sadd.s32 %s124, 1
    %s126 = scalar_select %p123, %s124, %s125
    %p129 = pneg %p123
    %p130 = scmp.eq.s32.totalorder %s10, 1
    %p131 = por %p129, %p130
    %p132 = scmp.ne.s32.totalorder %s124, %s127
    %p133 = scmp.eq.s32.totalorder %s10, 0
    %p134 = por %p132, %p133
    %p135 = scmp.ne.s32.totalorder %s124, %s127
    %p136 = scmp.eq.s32.totalorder %s15, 1
    %p137 = por %p135, %p136
    %p138 = scmp.ne.s32.totalorder %s127, %s128
    %p139 = scmp.eq.s32.totalorder %s15, 0
    %p140 = por %p138, %p139
    %p141 = scmp.ne.s32.totalorder %s127, %s128
    %p142 = scmp.eq.s32.totalorder %s16, 1
    %p143 = por %p141, %p142
    %p145 = scmp.ne.s32.totalorder %s128, %s144
    %p146 = scmp.eq.s32.totalorder %s16, 0
    %p147 = por %p145, %p146
    %p148 = scmp.le.s32.totalorder 1, %s10
    %p149 = scmp.lt.s32.totalorder %s10, 3
    %p150 = pnand %p148, %p149
    %p151 = pneg %p150
    // Predicated region
    $region9: #{encoder_fwd.10} parent=5 // pred_check
      _
    $region10: #{encoder_fwd.10} parent=5 // pred_check_branch
      %153 = sbr.rel (%p150) target = $region12
    $region11: #{encoder_fwd.10} parent=5 // pred_region
      %s154 = ssub.s32 %s10, 1
    $region12: #{encoder_fwd.10} parent=5 // pred_fallthru
      _
    %p155 = scmp.lt.s32.totalorder %s10, 2
    // Predicated region
    $region13: #{encoder_fwd.10} parent=5 // pred_check
      %p156 = pneg %p155
    $region14: #{encoder_fwd.10} parent=5 // pred_check_branch
      %158 = sbr.rel (%p156) target = $region16
    $region15: #{encoder_fwd.10} parent=5 // pred_region
      // Predicated region
      $region17: #{encoder_fwd.10} parent=15 // pred_check
        %p159 = pneg %p30
      $region18: #{encoder_fwd.10} parent=15 // pred_check_branch
        %161 = sbr.rel (%p159) target = $region20
      $region19: #{encoder_fwd.10} parent=15 // pred_region
        %p162 = scmp.lt.s32.totalorder %s10, 1
        %s163 = scalar_select %p162, %s10, 1
        %s164 = smul.addr %s163, 4
        %s165 = smul.addr %s164, 8
        %s166 = scalar_lea.vmem %s0, %s165
      $region20: #{encoder_fwd.10} parent=15 // pred_fallthru
        _
      // Predicated region
      $region21: #{encoder_fwd.10} parent=15 // pred_check
        %p167 = pneg %p56
      $region22: #{encoder_fwd.10} parent=15 // pred_check_branch
        %169 = sbr.rel (%p167) target = $region24
      $region23: #{encoder_fwd.10} parent=15 // pred_region
        %p170 = scmp.lt.s32.totalorder %s10, 1
        %s171 = scalar_select %p170, %s10, 1
        %s172 = smul.addr %s171, 8
        %s173 = scalar_lea.vmem %s1, %s172
      $region24: #{encoder_fwd.10} parent=15 // pred_fallthru
        _
      // Predicated region
      $region25: #{encoder_fwd.10} parent=15 // pred_check
        %p174 = pneg %p82
      $region26: #{encoder_fwd.10} parent=15 // pred_check_branch
        %176 = sbr.rel (%p174) target = $region28
      $region27: #{encoder_fwd.10} parent=15 // pred_region
        %p177 = scmp.lt.s32.totalorder %s10, 1
        %s178 = scalar_select %p177, %s10, 1
        %s179 = smul.addr %s178, 8
        %s180 = scalar_lea.vmem %s2, %s179
      $region28: #{encoder_fwd.10} parent=15 // pred_fallthru
        _
      // Predicated region
      $region29: #{encoder_fwd.10} parent=15 // pred_check
        %p181 = pneg %p108
      $region30: #{encoder_fwd.10} parent=15 // pred_check_branch
        %183 = sbr.rel (%p181) target = $region32
      $region31: #{encoder_fwd.10} parent=15 // pred_region
        %p184 = scmp.lt.s32.totalorder %s10, 1
        %s185 = scalar_select %p184, %s10, 1
        %s186 = smul.addr %s185, 4
        %s187 = scalar_lea.vmem %s3, %s186
      $region32: #{encoder_fwd.10} parent=15 // pred_fallthru
        _
    $region16: #{encoder_fwd.10} parent=5 // pred_fallthru
      _
    %p188 = scmp.le.s32.totalorder 1, %s10
    %p189 = scmp.lt.s32.totalorder %s10, 3
    %p190 = pnand %p188, %p189
    %p191 = pneg %p190
    // Predicated region
    $region33: #{encoder_fwd.10} parent=5 // pred_check
      _
    $region34: #{encoder_fwd.10} parent=5 // pred_check_branch
      %193 = sbr.rel (%p190) target = $region36
    $region35: #{encoder_fwd.10} parent=5 // pred_region
      %s194 = ssub.s32 %s10, 1
      %p195 = scmp.lt.s32.totalorder %s15, 1
      %s196 = scalar_select %p195, %s15, 1
      %s197 = smul.addr %s196, 4
      %s198 = smul.addr %s197, 8
      %s199 = scalar_lea.vmem %s0, %s198
      %p200 = pneg %p36
      %p201 = pneg %p33
      %p202 = scmp.lt.s32.totalorder %s15, 1
      %s203 = scalar_select %p202, %s15, 1
      %s204 = smul.addr %s203, 8
      %s205 = scalar_lea.vmem %s1, %s204
      %p206 = pneg %p62
      %p207 = pneg %p59
      %p208 = scmp.lt.s32.totalorder %s15, 1
      %s209 = scalar_select %p208, %s15, 1
      %s210 = smul.addr %s209, 8
      %s211 = scalar_lea.vmem %s2, %s210
      %p212 = pneg %p88
      %p213 = pneg %p85
      %p214 = scmp.lt.s32.totalorder %s15, 1
      %s215 = scalar_select %p214, %s15, 1
      %s216 = smul.addr %s215, 4
      %s217 = scalar_lea.vmem %s3, %s216
      %p218 = pneg %p114
      %p219 = pneg %p111
      %p220 = pneg %p140
      %p221 = pneg %p137
      %p222 = scmp.lt.s32.totalorder %s15, 1
      %s223 = scalar_select %p222, %s15, 1
      %s224 = smul.addr %s223, 8
      %s225 = scalar_lea.vmem %s4, %s224
      %p226 = scmp.lt.s32.totalorder %s15, 1
      %s227 = scalar_select %p226, %s15, 1
      %s228 = smul.addr %s227, 4
      %s229 = smul.addr %s228, 8
      %s230 = scalar_lea.vmem %s0, %s229
      %p231 = scmp.lt.s32.totalorder %s15, 1
      %s232 = scalar_select %p231, %s15, 1
      %s233 = smul.addr %s232, 8
      %s234 = scalar_lea.vmem %s1, %s233
      %p235 = scmp.lt.s32.totalorder %s15, 1
      %s236 = scalar_select %p235, %s15, 1
      %s237 = smul.addr %s236, 8
      %s238 = scalar_lea.vmem %s2, %s237
      %p239 = scmp.lt.s32.totalorder %s15, 1
      %s240 = scalar_select %p239, %s15, 1
      %s241 = smul.addr %s240, 4
      %s242 = scalar_lea.vmem %s3, %s241
      %p243 = scmp.lt.s32.totalorder %s15, 1
      %s244 = scalar_select %p243, %s15, 1
      %s245 = smul.addr %s244, 8
      %s246 = scalar_lea.vmem %s4, %s245
      %v248 = vld [vmem:[%s234] sm:$0xff]
      %v249 = vld [vmem:[%s238] sm:$0xff]
      %v250 = vpack.c.bf16 %v248, %v248
      %v251 = vpack.c.bf16 %v249, %v249
      %vm252 = vcmask 261120
      %v253 = vsel %vm252, %v249, 0.0
      %v254 = vrot.slane %v253, 4
      %v255 = vadd.f32 %v253, %v254
      %v256 = vrot.slane %v255, 2
      %v257 = vadd.f32 %v255, %v256
      %v258 = vrot.slane %v257, 1
      %v259 = vadd.f32 %v257, %v258
      %v260 = vrcp.pop 8.0
      %v261 = vmul.f32 %v259, %v260
      %v262 = vld [vmem:[%s230] sm:$0xff]
      %v263 = vpack.c.bf16 %v262, %v262
      %vm264 = vcmask 64512
      %v266 = vsel %vm264, %v263, 0
      %v269 = vsel %vm264, %v250, 0
      %271 = vmatprep.subr.bf16.mxu0 0
      %272 = vmatpush1.bf16.xpose.msra.mxu0 %v269
      %273 = vmatprep.subr.bf16.mxu0 0
      %274 = vmatpush1.bf16.xpose.msra.mxu0 0
      %275 = vmatprep.subr.bf16.mxu0 0
      %276 = vmatpush1.bf16.xpose.msra.mxu0 0
      %277 = vmatprep.subr.bf16.mxu0 0
      %278 = vmatpush1.bf16.xpose.msra.mxu0 0
      %279 = vmatprep.subr.bf16.mxu0 0
      %280 = vmatpush1.bf16.xpose.msra.mxu0 0
      %281 = vmatprep.subr.bf16.mxu0 0
      %282 = vmatpush1.bf16.xpose.msra.mxu0 0
      %283 = vmatprep.subr.bf16.mxu0 0
      %284 = vmatpush1.bf16.xpose.msra.mxu0 0
      %285 = vmatprep.subr.bf16.mxu0 0
      %286 = vmatpush1.bf16.xpose.msra.mxu0 0
      %287 = vmatprep.subr.bf16.mxu0 0
      %288 = vmatpush1.bf16.xpose.msra.mxu0 0
      %289 = vmatprep.subr.bf16.mxu0 0
      %290 = vmatpush1.bf16.xpose.msra.mxu0 0
      %291 = vmatprep.subr.bf16.mxu0 0
      %292 = vmatpush1.bf16.xpose.msra.mxu0 0
      %293 = vmatprep.subr.bf16.mxu0 0
      %294 = vmatpush1.bf16.xpose.msra.mxu0 0
      %295 = vmatprep.subr.bf16.mxu0 0
      %296 = vmatpush1.bf16.xpose.msra.mxu0 0
      %297 = vmatprep.subr.bf16.mxu0 0
      %298 = vmatpush1.bf16.xpose.msra.mxu0 0
      %299 = vmatprep.subr.bf16.mxu0 0
      %300 = vmatpush1.bf16.xpose.msra.mxu0 0
      %301 = vmatprep.subr.bf16.mxu0 0
      %302 = vmatpush1.bf16.xpose.msra.mxu0 0
      %303 = vmatprep.mubr.bf16.mxu0 0
      %304 = vmatmul.mubr.bf16.gmra.mrb[0].mxu0 %v266
      %v305 = vpop.f32.mrb[0].mxu0
      %v306 = vadd.f32 0.0, %v305
      %v307 = vpop.f32.mrb[0].mxu0
      %v308 = vpop.f32.mrb[0].mxu0
      %v309 = vpop.f32.mrb[0].mxu0
      %310 = vdwg.mxu0
      %v311 = vmul.f32 %v306, 0.35355338
      %v312 = vsel %vm264, %v311, -inf
      %313 = vmax.xlane.f32.xlu0 %v312
      %v314 = vpop.xlane.xlu0 %313
      %v315 = vsub.f32 %v311, %v314
      %v316 = vmul.f32 %v315, 1.442695
      %v317 = vpow.pop %v316
      %v318 = vsel %vm264, %v317, 0.0
      %319 = vadd.xlane.f32.xlu0 %v318
      %v320 = vpop.xlane.xlu0 %319
      %v321 = vrcp.pop %v320
      %v322 = vmul.f32 %v317, %v321
      %v323 = vpack.c.bf16 %v322, %v322
      %v325 = vsel %vm264, %v323, 0
      %vm327 = vcmask 1043456
      %v329 = vsel %vm327, %v251, 0
      %331 = vmatprep.subr.bf16.mxu0 0
      %332 = vmatpush1.bf16.msra.mxu0 %v329
      %333 = vmatprep.subr.bf16.mxu0 0
      %334 = vmatpush1.bf16.msra.mxu0 0
      %335 = vmatprep.subr.bf16.mxu0 0
      %336 = vmatpush1.bf16.msra.mxu0 0
      %337 = vmatprep.subr.bf16.mxu0 0
      %338 = vmatpush1.bf16.msra.mxu0 0
      %339 = vmatprep.subr.bf16.mxu0 0
      %340 = vmatpush1.bf16.msra.mxu0 0
      %341 = vmatprep.subr.bf16.mxu0 0
      %342 = vmatpush1.bf16.msra.mxu0 0
      %343 = vmatprep.subr.bf16.mxu0 0
      %344 = vmatpush1.bf16.msra.mxu0 0
      %345 = vmatprep.subr.bf16.mxu0 0
      %346 = vmatpush1.bf16.msra.mxu0 0
      %347 = vmatprep.subr.bf16.mxu0 0
      %348 = vmatpush1.bf16.msra.mxu0 0
      %349 = vmatprep.subr.bf16.mxu0 0
      %350 = vmatpush1.bf16.msra.mxu0 0
      %351 = vmatprep.subr.bf16.mxu0 0
      %352 = vmatpush1.bf16.msra.mxu0 0
      %353 = vmatprep.subr.bf16.mxu0 0
      %354 = vmatpush1.bf16.msra.mxu0 0
      %355 = vmatprep.subr.bf16.mxu0 0
      %356 = vmatpush1.bf16.msra.mxu0 0
      %357 = vmatprep.subr.bf16.mxu0 0
      %358 = vmatpush1.bf16.msra.mxu0 0
      %359 = vmatprep.subr.bf16.mxu0 0
      %360 = vmatpush1.bf16.msra.mxu0 0
      %361 = vmatprep.subr.bf16.mxu0 0
      %362 = vmatpush1.bf16.msra.mxu0 0
      %363 = vmatprep.mubr.bf16.mxu0 0
      %364 = vmatmul.mubr.bf16.gmra.mrb[0].mxu0 %v325
      %v365 = vpop.f32.mrb[0].mxu0
      %v366 = vadd.f32 0.0, %v365
      %v367 = vpop.f32.mrb[0].mxu0
      %v368 = vpop.f32.mrb[0].mxu0
      %v369 = vpop.f32.mrb[0].mxu0
      %370 = vdwg.mxu0
      %v371 = vld [vmem:[%s242] sm:$0x1]
      %v372 = vlaneseq
      %v373 = vshrl.u32 %v372, 7
      %v374 = vlaneseq
      %v375 = vshrl.u32 %v374, 7
      %v376 = vsub.s32 0, %v375
      %v377 = vrot.slane %v371, %v376
      %vm378 = vcmp.eq.s32.totalorder %v373, %v377
      %v379 = vsel %vm378, 1, 0
      %v380 = vcvt.s32.f32 %v379
      %v381 = vsel %vm264, %v380, 0.0
      %382 = vadd.xlane.f32.xlu0 %v381
      %v383 = vpop.xlane.xlu0 %382
      %v384 = vsub.f32 1.0, %v383
      %v385 = vmul.f32 %v384, %v261
      %v387 = vsel %vm264, %v380, 0
      %389 = vmatprep.subr.mxu0 0.0
      %390 = vmatpush1.msra.mxu0 %v366
      %391 = vmatprep.subr.mxu0 0.0
      %392 = vmatpush1.msra.mxu0 0.0
      %393 = vmatprep.subr.mxu0 0.0
      %394 = vmatpush1.msra.mxu0 0.0
      %395 = vmatprep.subr.mxu0 0.0
      %396 = vmatpush1.msra.mxu0 0.0
      %397 = vmatprep.subr.mxu0 0.0
      %398 = vmatpush1.msra.mxu0 0.0
      %399 = vmatprep.subr.mxu0 0.0
      %400 = vmatpush1.msra.mxu0 0.0
      %401 = vmatprep.subr.mxu0 0.0
      %402 = vmatpush1.msra.mxu0 0.0
      %403 = vmatprep.subr.mxu0 0.0
      %404 = vmatpush1.msra.mxu0 0.0
      %405 = vmatprep.subr.mxu0 0.0
      %406 = vmatpush1.msra.mxu0 0.0
      %407 = vmatprep.subr.mxu0 0.0
      %408 = vmatpush1.msra.mxu0 0.0
      %409 = vmatprep.subr.mxu0 0.0
      %410 = vmatpush1.msra.mxu0 0.0
      %411 = vmatprep.subr.mxu0 0.0
      %412 = vmatpush1.msra.mxu0 0.0
      %413 = vmatprep.subr.mxu0 0.0
      %414 = vmatpush1.msra.mxu0 0.0
      %415 = vmatprep.subr.mxu0 0.0
      %416 = vmatpush1.msra.mxu0 0.0
      %417 = vmatprep.subr.mxu0 0.0
      %418 = vmatpush1.msra.mxu0 0.0
      %419 = vmatprep.subr.mxu0 0.0
      %420 = vmatpush1.msra.mxu0 0.0
      %421 = vmatprep.subr.mxu0 0.0
      %422 = vmatpush1.msra.mxu0 0.0
      %423 = vmatprep.subr.mxu0 0.0
      %424 = vmatpush1.msra.mxu0 0.0
      %425 = vmatprep.subr.mxu0 0.0
      %426 = vmatpush1.msra.mxu0 0.0
      %427 = vmatprep.subr.mxu0 0.0
      %428 = vmatpush1.msra.mxu0 0.0
      %429 = vmatprep.subr.mxu0 0.0
      %430 = vmatpush1.msra.mxu0 0.0
      %431 = vmatprep.subr.mxu0 0.0
      %432 = vmatpush1.msra.mxu0 0.0
      %433 = vmatprep.subr.mxu0 0.0
      %434 = vmatpush1.msra.mxu0 0.0
      %435 = vmatprep.subr.mxu0 0.0
      %436 = vmatpush1.msra.mxu0 0.0
      %437 = vmatprep.subr.mxu0 0.0
      %438 = vmatpush1.msra.mxu0 0.0
      %439 = vmatprep.subr.mxu0 0.0
      %440 = vmatpush1.msra.mxu0 0.0
      %441 = vmatprep.subr.mxu0 0.0
      %442 = vmatpush1.msra.mxu0 0.0
      %443 = vmatprep.subr.mxu0 0.0
      %444 = vmatpush1.msra.mxu0 0.0
      %445 = vmatprep.subr.mxu0 0.0
      %446 = vmatpush1.msra.mxu0 0.0
      %447 = vmatprep.subr.mxu0 0.0
      %448 = vmatpush1.msra.mxu0 0.0
      %449 = vmatprep.subr.mxu0 0.0
      %450 = vmatpush1.msra.mxu0 0.0
      %451 = vmatprep.subr.mxu0 0.0
      %452 = vmatpush1.msra.mxu0 0.0
      %453 = vmatprep.mubr.f32.mxu0 0.0
      %454 = vmatmul.mubr.f32.gmra.mrb[0].mxu0 %v387
      %v455 = vpop.f32.mrb[0].mxu0
      %v456 = vadd.f32 %v385, %v455
      %v457 = vpop.f32.mrb[0].mxu0
      %458 = vdwg.mxu0
      %459 = vst.msk [vmem:[%s246] sm:$0xff] %vm264, %v456
      %s460 = scalar_lea.vmem %s230, 8
      %v461 = vld [vmem:[%s460] sm:$0xff]
      %v462 = vpack.c.bf16 %v461, %v461
      %464 = vrot.lane.b32.xlu0 %v250, 120
      %v465 = vpop.permute.xlu0 %464
      %v467 = vsel %vm264, %v462, 0
      %v470 = vsel %vm264, %v465, 0
      %472 = vmatprep.subr.bf16.mxu0 0
      %473 = vmatpush1.bf16.xpose.msra.mxu0 %v470
      %474 = vmatprep.subr.bf16.mxu0 0
      %475 = vmatpush1.bf16.xpose.msra.mxu0 0
      %476 = vmatprep.subr.bf16.mxu0 0
      %477 = vmatpush1.bf16.xpose.msra.mxu0 0
      %478 = vmatprep.subr.bf16.mxu0 0
      %479 = vmatpush1.bf16.xpose.msra.mxu0 0
      %480 = vmatprep.subr.bf16.mxu0 0
      %481 = vmatpush1.bf16.xpose.msra.mxu0 0
      %482 = vmatprep.subr.bf16.mxu0 0
      %483 = vmatpush1.bf16.xpose.msra.mxu0 0
      %484 = vmatprep.subr.bf16.mxu0 0
      %485 = vmatpush1.bf16.xpose.msra.mxu0 0
      %486 = vmatprep.subr.bf16.mxu0 0
      %487 = vmatpush1.bf16.xpose.msra.mxu0 0
      %488 = vmatprep.subr.bf16.mxu0 0
      %489 = vmatpush1.bf16.xpose.msra.mxu0 0
      %490 = vmatprep.subr.bf16.mxu0 0
      %491 = vmatpush1.bf16.xpose.msra.mxu0 0
      %492 = vmatprep.subr.bf16.mxu0 0
      %493 = vmatpush1.bf16.xpose.msra.mxu0 0
      %494 = vmatprep.subr.bf16.mxu0 0
      %495 = vmatpush1.bf16.xpose.msra.mxu0 0
      %496 = vmatprep.subr.bf16.mxu0 0
      %497 = vmatpush1.bf16.xpose.msra.mxu0 0
      %498 = vmatprep.subr.bf16.mxu0 0
      %499 = vmatpush1.bf16.xpose.msra.mxu0 0
      %500 = vmatprep.subr.bf16.mxu0 0
      %501 = vmatpush1.bf16.xpose.msra.mxu0 0
      %502 = vmatprep.subr.bf16.mxu0 0
      %503 = vmatpush1.bf16.xpose.msra.mxu0 0
      %504 = vmatprep.mubr.bf16.mxu0 0
      %505 = vmatmul.mubr.bf16.gmra.mrb[0].mxu0 %v467
      %v506 = vpop.f32.mrb[0].mxu0
      %v507 = vadd.f32 0.0, %v506
      %v508 = vpop.f32.mrb[0].mxu0
      %v509 = vpop.f32.mrb[0].mxu0
      %v510 = vpop.f32.mrb[0].mxu0
      %511 = vdwg.mxu0
      %v512 = vmul.f32 %v507, 0.35355338
      %v513 = vsel %vm264, %v512, -inf
      %514 = vmax.xlane.f32.xlu0 %v513
      %v515 = vpop.xlane.xlu0 %514
      %v516 = vsub.f32 %v512, %v515
      %v517 = vmul.f32 %v516, 1.442695
      %v518 = vpow.pop %v517
      %v519 = vsel %vm264, %v518, 0.0
      %520 = vadd.xlane.f32.xlu0 %v519
      %v521 = vpop.xlane.xlu0 %520
      %v522 = vrcp.pop %v521
      %v523 = vmul.f32 %v518, %v522
      %v524 = vpack.c.bf16 %v523, %v523
      %526 = vrot.lane.b32.xlu0 %v251, 120
      %v527 = vpop.permute.xlu0 %526
      %v529 = vsel %vm264, %v524, 0
      %v532 = vsel %vm327, %v527, 0
      %534 = vmatprep.subr.bf16.mxu0 0
      %535 = vmatpush1.bf16.msra.mxu0 %v532
      %536 = vmatprep.subr.bf16.mxu0 0
      %537 = vmatpush1.bf16.msra.mxu0 0
      %538 = vmatprep.subr.bf16.mxu0 0
      %539 = vmatpush1.bf16.msra.mxu0 0
      %540 = vmatprep.subr.bf16.mxu0 0
      %541 = vmatpush1.bf16.msra.mxu0 0
      %542 = vmatprep.subr.bf16.mxu0 0
      %543 = vmatpush1.bf16.msra.mxu0 0
      %544 = vmatprep.subr.bf16.mxu0 0
      %545 = vmatpush1.bf16.msra.mxu0 0
      %546 = vmatprep.subr.bf16.mxu0 0
      %547 = vmatpush1.bf16.msra.mxu0 0
      %548 = vmatprep.subr.bf16.mxu0 0
      %549 = vmatpush1.bf16.msra.mxu0 0
      %550 = vmatprep.subr.bf16.mxu0 0
      %551 = vmatpush1.bf16.msra.mxu0 0
      %552 = vmatprep.subr.bf16.mxu0 0
      %553 = vmatpush1.bf16.msra.mxu0 0
      %554 = vmatprep.subr.bf16.mxu0 0
      %555 = vmatpush1.bf16.msra.mxu0 0
      %556 = vmatprep.subr.bf16.mxu0 0
      %557 = vmatpush1.bf16.msra.mxu0 0
      %558 = vmatprep.subr.bf16.mxu0 0
      %559 = vmatpush1.bf16.msra.mxu0 0
      %560 = vmatprep.subr.bf16.mxu0 0
      %561 = vmatpush1.bf16.msra.mxu0 0
      %562 = vmatprep.subr.bf16.mxu0 0
      %563 = vmatpush1.bf16.msra.mxu0 0
      %564 = vmatprep.subr.bf16.mxu0 0
      %565 = vmatpush1.bf16.msra.mxu0 0
      %566 = vmatprep.mubr.bf16.mxu0 0
      %567 = vmatmul.mubr.bf16.gmra.mrb[0].mxu0 %v529
      %v568 = vpop.f32.mrb[0].mxu0
      %v569 = vadd.f32 0.0, %v568
      %v570 = vpop.f32.mrb[0].mxu0
      %v571 = vpop.f32.mrb[0].mxu0
      %v572 = vpop.f32.mrb[0].mxu0
      %573 = vdwg.mxu0
      %s574 = scalar_lea.vmem %s242, 1
      %v575 = vld [vmem:[%s574] sm:$0x1]
      %v576 = vlaneseq
      %v577 = vshrl.u32 %v576, 7
      %v578 = vsub.s32 0, %v577
      %v579 = vrot.slane %v575, %v578
      %vm580 = vcmp.eq.s32.totalorder %v373, %v579
      %v581 = vsel %vm580, 1, 0
      %v582 = vcvt.s32.f32 %v581
      %v583 = vsel %vm264, %v582, 0.0
      %584 = vadd.xlane.f32.xlu0 %v583
      %v585 = vpop.xlane.xlu0 %584
      %v586 = vsub.f32 1.0, %v585
      %v587 = vmul.f32 %v586, %v261
      %589 = vrot.lane.b32.xlu0 %v587, 120
      %v590 = vpop.permute.xlu0 %589
      %v593 = vsel %vm264, %v582, 0
      %595 = vmatprep.subr.mxu0 0.0
      %596 = vmatpush1.msra.mxu0 %v569
      %597 = vmatprep.subr.mxu0 0.0
      %598 = vmatpush1.msra.mxu0 0.0
      %599 = vmatprep.subr.mxu0 0.0
      %600 = vmatpush1.msra.mxu0 0.0
      %601 = vmatprep.subr.mxu0 0.0
      %602 = vmatpush1.msra.mxu0 0.0
      %603 = vmatprep.subr.mxu0 0.0
      %604 = vmatpush1.msra.mxu0 0.0
      %605 = vmatprep.subr.mxu0 0.0
      %606 = vmatpush1.msra.mxu0 0.0
      %607 = vmatprep.subr.mxu0 0.0
      %608 = vmatpush1.msra.mxu0 0.0
      %609 = vmatprep.subr.mxu0 0.0
      %610 = vmatpush1.msra.mxu0 0.0
      %611 = vmatprep.subr.mxu0 0.0
      %612 = vmatpush1.msra.mxu0 0.0
      %613 = vmatprep.subr.mxu0 0.0
      %614 = vmatpush1.msra.mxu0 0.0
      %615 = vmatprep.subr.mxu0 0.0
      %616 = vmatpush1.msra.mxu0 0.0
      %617 = vmatprep.subr.mxu0 0.0
      %618 = vmatpush1.msra.mxu0 0.0
      %619 = vmatprep.subr.mxu0 0.0
      %620 = vmatpush1.msra.mxu0 0.0
      %621 = vmatprep.subr.mxu0 0.0
      %622 = vmatpush1.msra.mxu0 0.0
      %623 = vmatprep.subr.mxu0 0.0
      %624 = vmatpush1.msra.mxu0 0.0
      %625 = vmatprep.subr.mxu0 0.0
      %626 = vmatpush1.msra.mxu0 0.0
      %627 = vmatprep.subr.mxu0 0.0
      %628 = vmatpush1.msra.mxu0 0.0
      %629 = vmatprep.subr.mxu0 0.0
      %630 = vmatpush1.msra.mxu0 0.0
      %631 = vmatprep.subr.mxu0 0.0
      %632 = vmatpush1.msra.mxu0 0.0
      %633 = vmatprep.subr.mxu0 0.0
      %634 = vmatpush1.msra.mxu0 0.0
      %635 = vmatprep.subr.mxu0 0.0
      %636 = vmatpush1.msra.mxu0 0.0
      %637 = vmatprep.subr.mxu0 0.0
      %638 = vmatpush1.msra.mxu0 0.0
      %639 = vmatprep.subr.mxu0 0.0
      %640 = vmatpush1.msra.mxu0 0.0
      %641 = vmatprep.subr.mxu0 0.0
      %642 = vmatpush1.msra.mxu0 0.0
      %643 = vmatprep.subr.mxu0 0.0
      %644 = vmatpush1.msra.mxu0 0.0
      %645 = vmatprep.subr.mxu0 0.0
      %646 = vmatpush1.msra.mxu0 0.0
      %647 = vmatprep.subr.mxu0 0.0
      %648 = vmatpush1.msra.mxu0 0.0
      %649 = vmatprep.subr.mxu0 0.0
      %650 = vmatpush1.msra.mxu0 0.0
      %651 = vmatprep.subr.mxu0 0.0
      %652 = vmatpush1.msra.mxu0 0.0
      %653 = vmatprep.subr.mxu0 0.0
      %654 = vmatpush1.msra.mxu0 0.0
      %655 = vmatprep.subr.mxu0 0.0
      %656 = vmatpush1.msra.mxu0 0.0
      %657 = vmatprep.subr.mxu0 0.0
      %658 = vmatpush1.msra.mxu0 0.0
      %659 = vmatprep.mubr.f32.mxu0 0.0
      %660 = vmatmul.mubr.f32.gmra.mrb[0].mxu0 %v593
      %v661 = vpop.f32.mrb[0].mxu0
      %v662 = vadd.f32 %v590, %v661
      %v663 = vpop.f32.mrb[0].mxu0
      %664 = vdwg.mxu0
      %666 = vrot.lane.b32.xlu0 %v662, 8
      %v667 = vpop.permute.xlu0 %666
      %vm669 = vcmask 130112
      %670 = vst.msk [vmem:[%s246] sm:$0xff] %vm669, %v667
      %s671 = scalar_lea.vmem %s230, 16
      %v672 = vld [vmem:[%s671] sm:$0xff]
      %v673 = vpack.c.bf16 %v672, %v672
      %674 = vrot.lane.b32.xlu0 %v250, 112
      %v675 = vpop.permute.xlu0 %674
      %v677 = vsel %vm264, %v673, 0
      %v680 = vsel %vm264, %v675, 0
      %682 = vmatprep.subr.bf16.mxu0 0
      %683 = vmatpush1.bf16.xpose.msra.mxu0 %v680
      %684 = vmatprep.subr.bf16.mxu0 0
      %685 = vmatpush1.bf16.xpose.msra.mxu0 0
      %686 = vmatprep.subr.bf16.mxu0 0
      %687 = vmatpush1.bf16.xpose.msra.mxu0 0
      %688 = vmatprep.subr.bf16.mxu0 0
      %689 = vmatpush1.bf16.xpose.msra.mxu0 0
      %690 = vmatprep.subr.bf16.mxu0 0
      %691 = vmatpush1.bf16.xpose.msra.mxu0 0
      %692 = vmatprep.subr.bf16.mxu0 0
      %693 = vmatpush1.bf16.xpose.msra.mxu0 0
      %694 = vmatprep.subr.bf16.mxu0 0
      %695 = vmatpush1.bf16.xpose.msra.mxu0 0
      %696 = vmatprep.subr.bf16.mxu0 0
      %697 = vmatpush1.bf16.xpose.msra.mxu0 0
      %698 = vmatprep.subr.bf16.mxu0 0
      %699 = vmatpush1.bf16.xpose.msra.mxu0 0
      %700 = vmatprep.subr.bf16.mxu0 0
      %701 = vmatpush1.bf16.xpose.msra.mxu0 0
      %702 = vmatprep.subr.bf16.mxu0 0
      %703 = vmatpush1.bf16.xpose.msra.mxu0 0
      %704 = vmatprep.subr.bf16.mxu0 0
      %705 = vmatpush1.bf16.xpose.msra.mxu0 0
      %706 = vmatprep.subr.bf16.mxu0 0
      %707 = vmatpush1.bf16.xpose.msra.mxu0 0
      %708 = vmatprep.subr.bf16.mxu0 0
      %709 = vmatpush1.bf16.xpose.msra.mxu0 0
      %710 = vmatprep.subr.bf16.mxu0 0
      %711 = vmatpush1.bf16.xpose.msra.mxu0 0
      %712 = vmatprep.subr.bf16.mxu0 0
      %713 = vmatpush1.bf16.xpose.msra.mxu0 0
      %714 = vmatprep.mubr.bf16.mxu0 0
      %715 = vmatmul.mubr.bf16.gmra.mrb[0].mxu0 %v677
      %v716 = vpop.f32.mrb[0].mxu0
      %v717 = vadd.f32 0.0, %v716
      %v718 = vpop.f32.mrb[0].mxu0
      %v719 = vpop.f32.mrb[0].mxu0
      %v720 = vpop.f32.mrb[0].mxu0
      %721 = vdwg.mxu0
      %v722 = vmul.f32 %v717, 0.35355338
      %v723 = vsel %vm264, %v722, -inf
      %724 = vmax.xlane.f32.xlu0 %v723
      %v725 = vpop.xlane.xlu0 %724
      %v726 = vsub.f32 %v722, %v725
      %v727 = vmul.f32 %v726, 1.442695
      %v728 = vpow.pop %v727
      %v729 = vsel %vm264, %v728, 0.0
      %730 = vadd.xlane.f32.xlu0 %v729
      %v731 = vpop.xlane.xlu0 %730
      %v732 = vrcp.pop %v731
      %v733 = vmul.f32 %v728, %v732
      %v734 = vpack.c.bf16 %v733, %v733
      %735 = vrot.lane.b32.xlu0 %v251, 112
      %v736 = vpop.permute.xlu0 %735
      %v738 = vsel %vm264, %v734, 0
      %v741 = vsel %vm327, %v736, 0
      %743 = vmatprep.subr.bf16.mxu0 0
      %744 = vmatpush1.bf16.msra.mxu0 %v741
      %745 = vmatprep.subr.bf16.mxu0 0
      %746 = vmatpush1.bf16.msra.mxu0 0
      %747 = vmatprep.subr.bf16.mxu0 0
      %748 = vmatpush1.bf16.msra.mxu0 0
      %749 = vmatprep.subr.bf16.mxu0 0
      %750 = vmatpush1.bf16.msra.mxu0 0
      %751 = vmatprep.subr.bf16.mxu0 0
      %752 = vmatpush1.bf16.msra.mxu0 0
      %753 = vmatprep.subr.bf16.mxu0 0
      %754 = vmatpush1.bf16.msra.mxu0 0
      %755 = vmatprep.subr.bf16.mxu0 0
      %756 = vmatpush1.bf16.msra.mxu0 0
      %757 = vmatprep.subr.bf16.mxu0 0
      %758 = vmatpush1.bf16.msra.mxu0 0
      %759 = vmatprep.subr.bf16.mxu0 0
      %760 = vmatpush1.bf16.msra.mxu0 0
      %761 = vmatprep.subr.bf16.mxu0 0
      %762 = vmatpush1.bf16.msra.mxu0 0
      %763 = vmatprep.subr.bf16.mxu0 0
      %764 = vmatpush1.bf16.msra.mxu0 0
      %765 = vmatprep.subr.bf16.mxu0 0
      %766 = vmatpush1.bf16.msra.mxu0 0
      %767 = vmatprep.subr.bf16.mxu0 0
      %768 = vmatpush1.bf16.msra.mxu0 0
      %769 = vmatprep.subr.bf16.mxu0 0
      %770 = vmatpush1.bf16.msra.mxu0 0
      %771 = vmatprep.subr.bf16.mxu0 0
      %772 = vmatpush1.bf16.msra.mxu0 0
      %773 = vmatprep.subr.bf16.mxu0 0
      %774 = vmatpush1.bf16.msra.mxu0 0
      %775 = vmatprep.mubr.bf16.mxu0 0
      %776 = vmatmul.mubr.bf16.gmra.mrb[0].mxu0 %v738
      %v777 = vpop.f32.mrb[0].mxu0
      %v778 = vadd.f32 0.0, %v777
      %v779 = vpop.f32.mrb[0].mxu0
      %v780 = vpop.f32.mrb[0].mxu0
      %v781 = vpop.f32.mrb[0].mxu0
      %782 = vdwg.mxu0
      %s783 = scalar_lea.vmem %s242, 2
      %v784 = vld [vmem:[%s783] sm:$0x1]
      %v785 = vlaneseq
      %v786 = vshrl.u32 %v785, 7
      %v787 = vsub.s32 0, %v786
      %v788 = vrot.slane %v784, %v787
      %vm789 = vcmp.eq.s32.totalorder %v373, %v788
      %v790 = vsel %vm789, 1, 0
      %v791 = vcvt.s32.f32 %v790
      %v792 = vsel %vm264, %v791, 0.0
      %793 = vadd.xlane.f32.xlu0 %v792
      %v794 = vpop.xlane.xlu0 %793
      %v795 = vsub.f32 1.0, %v794
      %v796 = vmul.f32 %v795, %v261
      %798 = vrot.lane.b32.xlu0 %v796, 112
      %v799 = vpop.permute.xlu0 %798
      %v802 = vsel %vm264, %v791, 0
      %804 = vmatprep.subr.mxu0 0.0
      %805 = vmatpush1.msra.mxu0 %v778
      %806 = vmatprep.subr.mxu0 0.0
      %807 = vmatpush1.msra.mxu0 0.0
      %808 = vmatprep.subr.mxu0 0.0
      %809 = vmatpush1.msra.mxu0 0.0
      %810 = vmatprep.subr.mxu0 0.0
      %811 = vmatpush1.msra.mxu0 0.0
      %812 = vmatprep.subr.mxu0 0.0
      %813 = vmatpush1.msra.mxu0 0.0
      %814 = vmatprep.subr.mxu0 0.0
      %815 = vmatpush1.msra.mxu0 0.0
      %816 = vmatprep.subr.mxu0 0.0
      %817 = vmatpush1.msra.mxu0 0.0
      %818 = vmatprep.subr.mxu0 0.0
      %819 = vmatpush1.msra.mxu0 0.0
      %820 = vmatprep.subr.mxu0 0.0
      %821 = vmatpush1.msra.mxu0 0.0
      %822 = vmatprep.subr.mxu0 0.0
      %823 = vmatpush1.msra.mxu0 0.0
      %824 = vmatprep.subr.mxu0 0.0
      %825 = vmatpush1.msra.mxu0 0.0
      %826 = vmatprep.subr.mxu0 0.0
      %827 = vmatpush1.msra.mxu0 0.0
      %828 = vmatprep.subr.mxu0 0.0
      %829 = vmatpush1.msra.mxu0 0.0
      %830 = vmatprep.subr.mxu0 0.0
      %831 = vmatpush1.msra.mxu0 0.0
      %832 = vmatprep.subr.mxu0 0.0
      %833 = vmatpush1.msra.mxu0 0.0
      %834 = vmatprep.subr.mxu0 0.0
      %835 = vmatpush1.msra.mxu0 0.0
      %836 = vmatprep.subr.mxu0 0.0
      %837 = vmatpush1.msra.mxu0 0.0
      %838 = vmatprep.subr.mxu0 0.0
      %839 = vmatpush1.msra.mxu0 0.0
      %840 = vmatprep.subr.mxu0 0.0
      %841 = vmatpush1.msra.mxu0 0.0
      %842 = vmatprep.subr.mxu0 0.0
      %843 = vmatpush1.msra.mxu0 0.0
      %844 = vmatprep.subr.mxu0 0.0
      %845 = vmatpush1.msra.mxu0 0.0
      %846 = vmatprep.subr.mxu0 0.0
      %847 = vmatpush1.msra.mxu0 0.0
      %848 = vmatprep.subr.mxu0 0.0
      %849 = vmatpush1.msra.mxu0 0.0
      %850 = vmatprep.subr.mxu0 0.0
      %851 = vmatpush1.msra.mxu0 0.0
      %852 = vmatprep.subr.mxu0 0.0
      %853 = vmatpush1.msra.mxu0 0.0
      %854 = vmatprep.subr.mxu0 0.0
      %855 = vmatpush1.msra.mxu0 0.0
      %856 = vmatprep.subr.mxu0 0.0
      %857 = vmatpush1.msra.mxu0 0.0
      %858 = vmatprep.subr.mxu0 0.0
      %859 = vmatpush1.msra.mxu0 0.0
      %860 = vmatprep.subr.mxu0 0.0
      %861 = vmatpush1.msra.mxu0 0.0
      %862 = vmatprep.subr.mxu0 0.0
      %863 = vmatpush1.msra.mxu0 0.0
      %864 = vmatprep.subr.mxu0 0.0
      %865 = vmatpush1.msra.mxu0 0.0
      %866 = vmatprep.subr.mxu0 0.0
      %867 = vmatpush1.msra.mxu0 0.0
      %868 = vmatprep.mubr.f32.mxu0 0.0
      %869 = vmatmul.mubr.f32.gmra.mrb[0].mxu0 %v802
      %v870 = vpop.f32.mrb[0].mxu0
      %v871 = vadd.f32 %v799, %v870
      %v872 = vpop.f32.mrb[0].mxu0
      %873 = vdwg.mxu0
      %875 = vrot.lane.b32.xlu0 %v871, 16
      %v876 = vpop.permute.xlu0 %875
      %vm878 = vcmask 195712
      %879 = vst.msk [vmem:[%s246] sm:$0xff] %vm878, %v876
      %s880 = scalar_lea.vmem %s230, 24
      %v881 = vld [vmem:[%s880] sm:$0xff]
      %v882 = vpack.c.bf16 %v881, %v881
      %883 = vrot.lane.b32.xlu0 %v250, 104
      %v884 = vpop.permute.xlu0 %883
      %v886 = vsel %vm264, %v882, 0
      %v889 = vsel %vm264, %v884, 0
      %891 = vmatprep.subr.bf16.mxu0 0
      %892 = vmatpush1.bf16.xpose.msra.mxu0 %v889
      %893 = vmatprep.subr.bf16.mxu0 0
      %894 = vmatpush1.bf16.xpose.msra.mxu0 0
      %895 = vmatprep.subr.bf16.mxu0 0
      %896 = vmatpush1.bf16.xpose.msra.mxu0 0
      %897 = vmatprep.subr.bf16.mxu0 0
      %898 = vmatpush1.bf16.xpose.msra.mxu0 0
      %899 = vmatprep.subr.bf16.mxu0 0
      %900 = vmatpush1.bf16.xpose.msra.mxu0 0
      %901 = vmatprep.subr.bf16.mxu0 0
      %902 = vmatpush1.bf16.xpose.msra.mxu0 0
      %903 = vmatprep.subr.bf16.mxu0 0
      %904 = vmatpush1.bf16.xpose.msra.mxu0 0
      %905 = vmatprep.subr.bf16.mxu0 0
      %906 = vmatpush1.bf16.xpose.msra.mxu0 0
      %907 = vmatprep.subr.bf16.mxu0 0
      %908 = vmatpush1.bf16.xpose.msra.mxu0 0
      %909 = vmatprep.subr.bf16.mxu0 0
      %910 = vmatpush1.bf16.xpose.msra.mxu0 0
      %911 = vmatprep.subr.bf16.mxu0 0
      %912 = vmatpush1.bf16.xpose.msra.mxu0 0
      %913 = vmatprep.subr.bf16.mxu0 0
      %914 = vmatpush1.bf16.xpose.msra.mxu0 0
      %915 = vmatprep.subr.bf16.mxu0 0
      %916 = vmatpush1.bf16.xpose.msra.mxu0 0
      %917 = vmatprep.subr.bf16.mxu0 0
      %918 = vmatpush1.bf16.xpose.msra.mxu0 0
      %919 = vmatprep.subr.bf16.mxu0 0
      %920 = vmatpush1.bf16.xpose.msra.mxu0 0
      %921 = vmatprep.subr.bf16.mxu0 0
      %922 = vmatpush1.bf16.xpose.msra.mxu0 0
      %923 = vmatprep.mubr.bf16.mxu0 0
      %924 = vmatmul.mubr.bf16.gmra.mrb[0].mxu0 %v886
      %v925 = vpop.f32.mrb[0].mxu0
      %v926 = vadd.f32 0.0, %v925
      %v927 = vpop.f32.mrb[0].mxu0
      %v928 = vpop.f32.mrb[0].mxu0
      %v929 = vpop.f32.mrb[0].mxu0
      %930 = vdwg.mxu0
      %v931 = vmul.f32 %v926, 0.35355338
      %v932 = vsel %vm264, %v931, -inf
      %933 = vmax.xlane.f32.xlu0 %v932
      %v934 = vpop.xlane.xlu0 %933
      %v935 = vsub.f32 %v931, %v934
      %v936 = vmul.f32 %v935, 1.442695
      %v937 = vpow.pop %v936
      %v938 = vsel %vm264, %v937, 0.0
      %939 = vadd.xlane.f32.xlu0 %v938
      %v940 = vpop.xlane.xlu0 %939
      %v941 = vrcp.pop %v940
      %v942 = vmul.f32 %v937, %v941
      %v943 = vpack.c.bf16 %v942, %v942
      %944 = vrot.lane.b32.xlu0 %v251, 104
      %v945 = vpop.permute.xlu0 %944
      %v947 = vsel %vm264, %v943, 0
      %v950 = vsel %vm327, %v945, 0
      %952 = vmatprep.subr.bf16.mxu0 0
      %953 = vmatpush1.bf16.msra.mxu0 %v950
      %954 = vmatprep.subr.bf16.mxu0 0
      %955 = vmatpush1.bf16.msra.mxu0 0
      %956 = vmatprep.subr.bf16.mxu0 0
      %957 = vmatpush1.bf16.msra.mxu0 0
      %958 = vmatprep.subr.bf16.mxu0 0
      %959 = vmatpush1.bf16.msra.mxu0 0
      %960 = vmatprep.subr.bf16.mxu0 0
      %961 = vmatpush1.bf16.msra.mxu0 0
      %962 = vmatprep.subr.bf16.mxu0 0
      %963 = vmatpush1.bf16.msra.mxu0 0
      %964 = vmatprep.subr.bf16.mxu0 0
      %965 = vmatpush1.bf16.msra.mxu0 0
      %966 = vmatprep.subr.bf16.mxu0 0
      %967 = vmatpush1.bf16.msra.mxu0 0
      %968 = vmatprep.subr.bf16.mxu0 0
      %969 = vmatpush1.bf16.msra.mxu0 0
      %970 = vmatprep.subr.bf16.mxu0 0
      %971 = vmatpush1.bf16.msra.mxu0 0
      %972 = vmatprep.subr.bf16.mxu0 0
      %973 = vmatpush1.bf16.msra.mxu0 0
      %974 = vmatprep.subr.bf16.mxu0 0
      %975 = vmatpush1.bf16.msra.mxu0 0
      %976 = vmatprep.subr.bf16.mxu0 0
      %977 = vmatpush1.bf16.msra.mxu0 0
      %978 = vmatprep.subr.bf16.mxu0 0
      %979 = vmatpush1.bf16.msra.mxu0 0
      %980 = vmatprep.subr.bf16.mxu0 0
      %981 = vmatpush1.bf16.msra.mxu0 0
      %982 = vmatprep.subr.bf16.mxu0 0
      %983 = vmatpush1.bf16.msra.mxu0 0
      %984 = vmatprep.mubr.bf16.mxu0 0
      %985 = vmatmul.mubr.bf16.gmra.mrb[0].mxu0 %v947
      %v986 = vpop.f32.mrb[0].mxu0
      %v987 = vadd.f32 0.0, %v986
      %v988 = vpop.f32.mrb[0].mxu0
      %v989 = vpop.f32.mrb[0].mxu0
      %v990 = vpop.f32.mrb[0].mxu0
      %991 = vdwg.mxu0
      %s992 = scalar_lea.vmem %s242, 3
      %v993 = vld [vmem:[%s992] sm:$0x1]
      %v994 = vlaneseq
      %v995 = vshrl.u32 %v994, 7
      %v996 = vsub.s32 0, %v995
      %v997 = vrot.slane %v993, %v996
      %vm998 = vcmp.eq.s32.totalorder %v373, %v997
      %v999 = vsel %vm998, 1, 0
      %v1000 = vcvt.s32.f32 %v999
      %v1001 = vsel %vm264, %v1000, 0.0
      %1002 = vadd.xlane.f32.xlu0 %v1001
      %v1003 = vpop.xlane.xlu0 %1002
      %v1004 = vsub.f32 1.0, %v1003
      %v1005 = vmul.f32 %v1004, %v261
      %1007 = vrot.lane.b32.xlu0 %v1005, 104
      %v1008 = vpop.permute.xlu0 %1007
      %v1011 = vsel %vm264, %v1000, 0
      %1013 = vmatprep.subr.mxu0 0.0
      %1014 = vmatpush1.msra.mxu0 %v987
      %1015 = vmatprep.subr.mxu0 0.0
      %1016 = vmatpush1.msra.mxu0 0.0
      %1017 = vmatprep.subr.mxu0 0.0
      %1018 = vmatpush1.msra.mxu0 0.0
      %1019 = vmatprep.subr.mxu0 0.0
      %1020 = vmatpush1.msra.mxu0 0.0
      %1021 = vmatprep.subr.mxu0 0.0
      %1022 = vmatpush1.msra.mxu0 0.0
      %1023 = vmatprep.subr.mxu0 0.0
      %1024 = vmatpush1.msra.mxu0 0.0
      %1025 = vmatprep.subr.mxu0 0.0
      %1026 = vmatpush1.msra.mxu0 0.0
      %1027 = vmatprep.subr.mxu0 0.0
      %1028 = vmatpush1.msra.mxu0 0.0
      %1029 = vmatprep.subr.mxu0 0.0
      %1030 = vmatpush1.msra.mxu0 0.0
      %1031 = vmatprep.subr.mxu0 0.0
      %1032 = vmatpush1.msra.mxu0 0.0
      %1033 = vmatprep.subr.mxu0 0.0
      %1034 = vmatpush1.msra.mxu0 0.0
      %1035 = vmatprep.subr.mxu0 0.0
      %1036 = vmatpush1.msra.mxu0 0.0
      %1037 = vmatprep.subr.mxu0 0.0
      %1038 = vmatpush1.msra.mxu0 0.0
      %1039 = vmatprep.subr.mxu0 0.0
      %1040 = vmatpush1.msra.mxu0 0.0
      %1041 = vmatprep.subr.mxu0 0.0
      %1042 = vmatpush1.msra.mxu0 0.0
      %1043 = vmatprep.subr.mxu0 0.0
      %1044 = vmatpush1.msra.mxu0 0.0
      %1045 = vmatprep.subr.mxu0 0.0
      %1046 = vmatpush1.msra.mxu0 0.0
      %1047 = vmatprep.subr.mxu0 0.0
      %1048 = vmatpush1.msra.mxu0 0.0
      %1049 = vmatprep.subr.mxu0 0.0
      %1050 = vmatpush1.msra.mxu0 0.0
      %1051 = vmatprep.subr.mxu0 0.0
      %1052 = vmatpush1.msra.mxu0 0.0
      %1053 = vmatprep.subr.mxu0 0.0
      %1054 = vmatpush1.msra.mxu0 0.0
      %1055 = vmatprep.subr.mxu0 0.0
      %1056 = vmatpush1.msra.mxu0 0.0
      %1057 = vmatprep.subr.mxu0 0.0
      %1058 = vmatpush1.msra.mxu0 0.0
      %1059 = vmatprep.subr.mxu0 0.0
      %1060 = vmatpush1.msra.mxu0 0.0
      %1061 = vmatprep.subr.mxu0 0.0
      %1062 = vmatpush1.msra.mxu0 0.0
      %1063 = vmatprep.subr.mxu0 0.0
      %1064 = vmatpush1.msra.mxu0 0.0
      %1065 = vmatprep.subr.mxu0 0.0
      %1066 = vmatpush1.msra.mxu0 0.0
      %1067 = vmatprep.subr.mxu0 0.0
      %1068 = vmatpush1.msra.mxu0 0.0
      %1069 = vmatprep.subr.mxu0 0.0
      %1070 = vmatpush1.msra.mxu0 0.0
      %1071 = vmatprep.subr.mxu0 0.0
      %1072 = vmatpush1.msra.mxu0 0.0
      %1073 = vmatprep.subr.mxu0 0.0
      %1074 = vmatpush1.msra.mxu0 0.0
      %1075 = vmatprep.subr.mxu0 0.0
      %1076 = vmatpush1.msra.mxu0 0.0
      %1077 = vmatprep.mubr.f32.mxu0 0.0
      %1078 = vmatmul.mubr.f32.gmra.mrb[0].mxu0 %v1011
      %v1079 = vpop.f32.mrb[0].mxu0
      %v1080 = vadd.f32 %v1008, %v1079
      %v1081 = vpop.f32.mrb[0].mxu0
      %1082 = vdwg.mxu0
      %1084 = vrot.lane.b32.xlu0 %v1080, 24
      %v1085 = vpop.permute.xlu0 %1084
      %vm1087 = vcmask 261312
      %1088 = vst.msk [vmem:[%s246] sm:$0xff] %vm1087, %v1085
      %p1089 = scmp.lt.s32.totalorder %s15, 1
      %s1090 = scalar_select %p1089, %s15, 1
      %s1091 = smul.addr %s1090, 8
      %s1092 = scalar_lea.vmem %s4, %s1091
      // Predicated region
      $region37: #{encoder_fwd.10} parent=35 // pred_check
        %p1093 = pneg %p137
      $region38: #{encoder_fwd.10} parent=35 // pred_check_branch
        %1095 = sbr.rel (%p1093) target = $region40
      $region39: #{encoder_fwd.10} parent=35 // pred_region
        _
      $region40: #{encoder_fwd.10} parent=35 // pred_fallthru
        _
    $region36: #{encoder_fwd.10} parent=5 // pred_fallthru
      _
    %p1096 = scmp.le.s32.totalorder 2, %s10
    // Predicated region
    $region41: #{encoder_fwd.10} parent=5 // pred_check
      %p1097 = pneg %p1096
    $region42: #{encoder_fwd.10} parent=5 // pred_check_branch
      %1099 = sbr.rel (%p1097) target = $region44
    $region43: #{encoder_fwd.10} parent=5 // pred_region
      %s1100 = ssub.s32 %s10, 2
      // Predicated region
      $region45: #{encoder_fwd.10} parent=43 // pred_check
        %p1101 = pneg %p143
      $region46: #{encoder_fwd.10} parent=43 // pred_check_branch
        %1103 = sbr.rel (%p1101) target = $region48
      $region47: #{encoder_fwd.10} parent=43 // pred_region
        %p1104 = scmp.lt.s32.totalorder %s16, 1
        %s1105 = scalar_select %p1104, %s16, 1
        %s1106 = smul.addr %s1105, 8
        %s1107 = scalar_lea.vmem %s4, %s1106
      $region48: #{encoder_fwd.10} parent=43 // pred_fallthru
        _
    $region44: #{encoder_fwd.10} parent=5 // pred_fallthru
      _
  $region6: #{encoder_fwd.10} parent=0 // loop_footer
    %s14 = sadd.s32 1, %s10
  $region7: #{encoder_fwd.10} parent=0 // loop_footer_branch
    %9 = sbr.rel target = $region3
  $region8: #{encoder_fwd.10} parent=0 // loop_exit
    _

// kernel: encoder_fwd.14
$region0: #{encoder_fwd.14}
  #allocation0 [shape = 'u32[]', space=smem, size = 0x4, offset = 0x4, fixed_abs, tag = 'smem constant byte address 0x4 - core index']
  #allocation1 [shape = 'u32[144,128]{1,0:T(1,128)}', space=vmem, size = 0x12000, scoped, tag = 'internal scratch']
  #allocation2 [shape = 'f32[16,32]{1,0:T(8,128)}', space=vmem, size = 0x2000, scoped, tag = 'scratch operand']
  %s0 = inlined_call_operand.vmem [shape: f32[16,32], index: 0, kind: input, shape index: {}]
  %s1 = inlined_call_operand.vmem [shape: bf16[32,64], index: 1, kind: input, shape index: {}]
  %s2 = inlined_call_operand.vmem [shape: f32[1,64], index: 2, kind: input, shape index: {}]
  %s3 = inlined_call_operand.vmem [shape: bf16[64,32], index: 3, kind: input, shape index: {}]
  %s4 = inlined_call_operand.vmem [shape: f32[1,32], index: 4, kind: input, shape index: {}]
  %s5 = inlined_call_operand.vmem [shape: f32[1,32], index: 5, kind: input, shape index: {}]
  %s6 = inlined_call_operand.vmem [shape: f32[1,32], index: 6, kind: input, shape index: {}]
  %s7 = inlined_call_operand.vmem [shape: f32[16,32], index: 7, kind: output, shape index: {}]
  %s8 = sld [smem:[#allocation0]]
  $region46: #{encoder_fwd.14} parent=0
    _
  %s10 = ssub.s32 1, %s8
  %s11 = scalar_select 0, %s10, %s8
  // Predicated region
  $region2: #{encoder_fwd.14} parent=0 // pred_check
    _
  $region3: #{encoder_fwd.14} parent=0 // pred_check_branch
    %13 = sbr.rel (0) target = $region5
  $region4: #{encoder_fwd.14} parent=0 // pred_region
    _
  $region5: #{encoder_fwd.14} parent=0 // pred_fallthru
    _
  // Predicated region
  $region6: #{encoder_fwd.14} parent=0 // pred_check
    _
  $region7: #{encoder_fwd.14} parent=0 // pred_check_branch
    %15 = sbr.rel (0) target = $region9
  $region8: #{encoder_fwd.14} parent=0 // pred_region
    _
  $region9: #{encoder_fwd.14} parent=0 // pred_fallthru
    _
  // Predicated region
  $region10: #{encoder_fwd.14} parent=0 // pred_check
    _
  $region11: #{encoder_fwd.14} parent=0 // pred_check_branch
    %17 = sbr.rel (0) target = $region13
  $region12: #{encoder_fwd.14} parent=0 // pred_region
    _
  $region13: #{encoder_fwd.14} parent=0 // pred_fallthru
    _
  // Predicated region
  $region14: #{encoder_fwd.14} parent=0 // pred_check
    _
  $region15: #{encoder_fwd.14} parent=0 // pred_check_branch
    %19 = sbr.rel (0) target = $region17
  $region16: #{encoder_fwd.14} parent=0 // pred_region
    _
  $region17: #{encoder_fwd.14} parent=0 // pred_fallthru
    _
  // Predicated region
  $region18: #{encoder_fwd.14} parent=0 // pred_check
    _
  $region19: #{encoder_fwd.14} parent=0 // pred_check_branch
    %21 = sbr.rel (0) target = $region21
  $region20: #{encoder_fwd.14} parent=0 // pred_region
    _
  $region21: #{encoder_fwd.14} parent=0 // pred_fallthru
    _
  // Predicated region
  $region22: #{encoder_fwd.14} parent=0 // pred_check
    _
  $region23: #{encoder_fwd.14} parent=0 // pred_check_branch
    %23 = sbr.rel (0) target = $region25
  $region24: #{encoder_fwd.14} parent=0 // pred_region
    _
  $region25: #{encoder_fwd.14} parent=0 // pred_fallthru
    _
  // Predicated region
  $region26: #{encoder_fwd.14} parent=0 // pred_check
    _
  $region27: #{encoder_fwd.14} parent=0 // pred_check_branch
    %25 = sbr.rel (0) target = $region29
  $region28: #{encoder_fwd.14} parent=0 // pred_region
    _
  $region29: #{encoder_fwd.14} parent=0 // pred_fallthru
    _
  %p27 = scmp.eq.s32.totalorder 0, 0
  // Predicated region
  $region30: #{encoder_fwd.14} parent=0 // pred_check
    %p28 = pneg %p27
  $region31: #{encoder_fwd.14} parent=0 // pred_check_branch
    %30 = sbr.rel (%p28) target = $region33
  $region32: #{encoder_fwd.14} parent=0 // pred_region
    %vm31 = vcmask 261120
    %32 = vst.msk [vmem:[#allocation2] sm:$0xff] %vm31, 0.0
    %33 = vst.msk [vmem:[#allocation2 + $0x8] sm:$0xff] %vm31, 0.0
  $region33: #{encoder_fwd.14} parent=0 // pred_fallthru
    _
  %v34 = vld [vmem:[%s0] sm:$0xff]
  %v35 = vld [vmem:[%s0 + $0x8] sm:$0xff]
  %v36 = vpack.c.bf16 %v35, %v34
  %v37 = vld [vmem:[%s1] sm:$0xf]
  %v38 = vld [vmem:[%s1 + $0x4] sm:$0xf]
  %v39 = vld [vmem:[%s1 + $0x8] sm:$0xf]
  %v40 = vld [vmem:[%s1 + $0xc] sm:$0xf]
  %v41 = vld [vmem:[%s2] sm:$0x1]
  %v43 = vlaneseq
  %v44 = vshrl.u32 %v43, 7
  %v45 = vsub.s32 0, %v44
  %v46 = vrot.slane %v41, %v45
  %v52 = vunpack.c.l.b16 %v37
  %v53 = vunpack.c.l.b16 %v38
  %v54 = vunpack.c.l.b16 %v39
  %v55 = vunpack.c.l.b16 %v40
  %v56 = vpack.c.b16 %v53, %v52
  %v57 = vpack.c.b16 %v55, %v54
  %vm60 = vcmask 261120
  %v62 = vsel %vm60, %v36, 0
  %64 = vmatprep.subr.bf16.mxu0 0
  %65 = vmatpush1.bf16.msra.mxu0 %v56
  %66 = vmatprep.subr.bf16.mxu0 0
  %67 = vmatpush1.bf16.msra.mxu0 %v57
  %68 = vmatprep.subr.bf16.mxu0 0
  %69 = vmatpush1.bf16.msra.mxu0 0
  %70 = vmatprep.subr.bf16.mxu0 0
  %71 = vmatpush1.bf16.msra.mxu0 0
  %72 = vmatprep.subr.bf16.mxu0 0
  %73 = vmatpush1.bf16.msra.mxu0 0
  %74 = vmatprep.subr.bf16.mxu0 0
  %75 = vmatpush1.bf16.msra.mxu0 0
  %76 = vmatprep.subr.bf16.mxu0 0
  %77 = vmatpush1.bf16.msra.mxu0 0
  %78 = vmatprep.subr.bf16.mxu0 0
  %79 = vmatpush1.bf16.msra.mxu0 0
  %80 = vmatprep.subr.bf16.mxu0 0
  %81 = vmatpush1.bf16.msra.mxu0 0
  %82 = vmatprep.subr.bf16.mxu0 0
  %83 = vmatpush1.bf16.msra.mxu0 0
  %84 = vmatprep.subr.bf16.mxu0 0
  %85 = vmatpush1.bf16.msra.mxu0 0
  %86 = vmatprep.subr.bf16.mxu0 0
  %87 = vmatpush1.bf16.msra.mxu0 0
  %88 = vmatprep.subr.bf16.mxu0 0
  %89 = vmatpush1.bf16.msra.mxu0 0
  %90 = vmatprep.subr.bf16.mxu0 0
  %91 = vmatpush1.bf16.msra.mxu0 0
  %92 = vmatprep.subr.bf16.mxu0 0
  %93 = vmatpush1.bf16.msra.mxu0 0
  %94 = vmatprep.subr.bf16.mxu0 0
  %95 = vmatpush1.bf16.msra.mxu0 0
  %96 = vmatprep.mubr.bf16.mxu0 0
  %97 = vmatmul.mubr.bf16.gmra.mrb[0].mxu0 %v62
  %v98 = vpop.f32.mrb[0].mxu0
  %v99 = vadd.f32 %v46, %v98
  %v100 = vpop.f32.mrb[0].mxu0
  %v101 = vpop.f32.mrb[0].mxu0
  %v102 = vadd.f32 %v46, %v101
  %v103 = vpop.f32.mrb[0].mxu0
  %104 = vdwg.mxu0
  %v105 = vmax.f32 %v99, 0.0
  %v106 = vmax.f32 %v102, 0.0
  %v107 = vld [vmem:[#allocation2] sm:$0xff]
  %v108 = vld [vmem:[#allocation2 + $0x8] sm:$0xff]
  %v109 = vpack.c.bf16 %v106, %v105
  %v110 = vld [vmem:[%s3] sm:$0xf]
  %v111 = vld [vmem:[%s3 + $0x4] sm:$0xf]
  %v112 = vld [vmem:[%s3 + $0x8] sm:$0xf]
  %v113 = vld [vmem:[%s3 + $0xc] sm:$0xf]
  %v114 = vld [vmem:[%s3 + $0x10] sm:$0xf]
  %v115 = vld [vmem:[%s3 + $0x14] sm:$0xf]
  %v116 = vld [vmem:[%s3 + $0x18] sm:$0xf]
  %v117 = vld [vmem:[%s3 + $0x1c] sm:$0xf]
  %v126 = vunpack.c.l.b16 %v110
  %v127 = vunpack.c.l.b16 %v111
  %v128 = vunpack.c.l.b16 %v112
  %v129 = vunpack.c.l.b16 %v113
  %v130 = vunpack.c.l.b16 %v114
  %v131 = vunpack.c.l.b16 %v115
  %v132 = vunpack.c.l.b16 %v116
  %v133 = vunpack.c.l.b16 %v117
  %v134 = vpack.c.b16 %v127, %v126
  %v135 = vpack.c.b16 %v129, %v128
  %v136 = vpack.c.b16 %v131, %v130
  %v137 = vpack.c.b16 %v133, %v132
  %vm142 = vcmask 523264
  %v144 = vsel %vm142, %v109, 0
  %146 = vmatprep.subr.bf16.mxu0 0
  %147 = vmatpush1.bf16.msra.mxu0 %v134
  %148 = vmatprep.subr.bf16.mxu0 0
  %149 = vmatpush1.bf16.msra.mxu0 %v135
  %150 = vmatprep.subr.bf16.mxu0 0
  %151 = vmatpush1.bf16.msra.mxu0 %v136
  %152 = vmatprep.subr.bf16.mxu0 0
  %153 = vmatpush1.bf16.msra.mxu0 %v137
  %154 = vmatprep.subr.bf16.mxu0 0
  %155 = vmatpush1.bf16.msra.mxu0 0
  %156 = vmatprep.subr.bf16.mxu0 0
  %157 = vmatpush1.bf16.msra.mxu0 0
  %158 = vmatprep.subr.bf16.mxu0 0
  %159 = vmatpush1.bf16.msra.mxu0 0
  %160 = vmatprep.subr.bf16.mxu0 0
  %161 = vmatpush1.bf16.msra.mxu0 0
  %162 = vmatprep.subr.bf16.mxu0 0
  %163 = vmatpush1.bf16.msra.mxu0 0
  %164 = vmatprep.subr.bf16.mxu0 0
  %165 = vmatpush1.bf16.msra.mxu0 0
  %166 = vmatprep.subr.bf16.mxu0 0
  %167 = vmatpush1.bf16.msra.mxu0 0
  %168 = vmatprep.subr.bf16.mxu0 0
  %169 = vmatpush1.bf16.msra.mxu0 0
  %170 = vmatprep.subr.bf16.mxu0 0
  %171 = vmatpush1.bf16.msra.mxu0 0
  %172 = vmatprep.subr.bf16.mxu0 0
  %173 = vmatpush1.bf16.msra.mxu0 0
  %174 = vmatprep.subr.bf16.mxu0 0
  %175 = vmatpush1.bf16.msra.mxu0 0
  %176 = vmatprep.subr.bf16.mxu0 0
  %177 = vmatpush1.bf16.msra.mxu0 0
  %178 = vmatprep.mubr.bf16.mxu0 0
  %179 = vmatmul.mubr.bf16.gmra.mrb[0].mxu0 %v144
  %v180 = vpop.f32.mrb[0].mxu0
  %v181 = vadd.f32 0.0, %v180
  %v182 = vpop.f32.mrb[0].mxu0
  %v183 = vpop.f32.mrb[0].mxu0
  %v184 = vadd.f32 0.0, %v183
  %v185 = vpop.f32.mrb[0].mxu0
  %186 = vdwg.mxu0
  %v187 = vadd.f32 %v107, %v181
  %v188 = vadd.f32 %v108, %v184
  %189 = vst.msk [vmem:[#allocation2] sm:$0xff] %vm60, %v187
  %190 = vst.msk [vmem:[#allocation2 + $0x8] sm:$0xff] %vm60, %v188
  // Predicated region
  $region34: #{encoder_fwd.14} parent=0 // pred_check
    %p191 = pneg %p27
  $region35: #{encoder_fwd.14} parent=0 // pred_check_branch
    %193 = sbr.rel (%p191) target = $region37
  $region36: #{encoder_fwd.14} parent=0 // pred_region
    %v194 = vld [vmem:[#allocation2] sm:$0xff]
    %v195 = vld [vmem:[#allocation2 + $0x8] sm:$0xff]
    %v196 = vadd.f32 %v34, %v194
    %v197 = vadd.f32 %v35, %v195
    %v198 = vld [vmem:[%s4] sm:$0x1]
    %v200 = vlaneseq
    %v201 = vshrl.u32 %v200, 7
    %v202 = vsub.s32 0, %v201
    %v203 = vrot.slane %v198, %v202
    %v205 = vadd.f32 %v196, %v203
    %v206 = vadd.f32 %v197, %v203
    %v207 = vsel %vm60, %v205, 0.0
    %208 = vadd.xlane.f32.xlu0 %v207
    %v209 = vpop.xlane.xlu0 %208
    %v210 = vsel %vm60, %v206, 0.0
    %211 = vadd.xlane.f32.xlu0 %v210
    %v212 = vpop.xlane.xlu0 %211
    %v213 = vrcp.pop 32.0
    %v214 = vmul.f32 %v209, %v213
    %v215 = vmul.f32 %v212, %v213
    %v216 = vsub.f32 %v205, %v214
    %v217 = vsub.f32 %v206, %v215
    %v218 = vmul.f32 %v216, %v216
    %v219 = vmul.f32 %v217, %v217
    %v220 = vsel %vm60, %v218, 0.0
    %221 = vadd.xlane.f32.xlu0 %v220
    %v222 = vpop.xlane.xlu0 %221
    %v223 = vsel %vm60, %v219, 0.0
    %224 = vadd.xlane.f32.xlu0 %v223
    %v225 = vpop.xlane.xlu0 %224
    %v226 = vmul.f32 %v222, %v213
    %v227 = vmul.f32 %v225, %v213
    %v228 = vadd.f32 %v226, 1e-05
    %v229 = vadd.f32 %v227, 1e-05
    %v230 = vrsqrt.pop %v228
    %v231 = vrsqrt.pop %v229
    %v232 = vmul.f32 %v216, %v230
    %v233 = vmul.f32 %v217, %v231
    %v234 = vld [vmem:[%s5] sm:$0x1]
    %v236 = vlaneseq
    %v237 = vshrl.u32 %v236, 7
    %v238 = vsub.s32 0, %v237
    %v239 = vrot.slane %v234, %v238
    %v241 = vmul.f32 %v232, %v239
    %v242 = vmul.f32 %v233, %v239
    %v243 = vld [vmem:[%s6] sm:$0x1]
    %v245 = vlaneseq
    %v246 = vshrl.u32 %v245, 7
    %v247 = vsub.s32 0, %v246
    %v248 = vrot.slane %v243, %v247
    %v250 = vadd.f32 %v241, %v248
    %v251 = vadd.f32 %v242, %v248
    %252 = vst.msk [vmem:[%s7] sm:$0xff] %vm60, %v250
    %253 = vst.msk [vmem:[%s7 + $0x8] sm:$0xff] %vm60, %v251
  $region37: #{encoder_fwd.14} parent=0 // pred_fallthru
    _
  // Predicated region
  $region38: #{encoder_fwd.14} parent=0 // pred_check
    _
  $region39: #{encoder_fwd.14} parent=0 // pred_check_branch
    %255 = sbr.rel (0) target = $region41
  $region40: #{encoder_fwd.14} parent=0 // pred_region
    _
  $region41: #{encoder_fwd.14} parent=0 // pred_fallthru
    _
  // Predicated region
  $region42: #{encoder_fwd.14} parent=0 // pred_check
    _
  $region43: #{encoder_fwd.14} parent=0 // pred_check_branch
    %257 = sbr.rel (0) target = $region45
  $region44: #{encoder_fwd.14} parent=0 // pred_region
    _
  $region45: #{encoder_fwd.14} parent=0 // pred_fallthru
    _

// kernel: encoder_fwd.19
$region0: #{encoder_fwd.19}
  #allocation0 [shape = 'u32[]', space=smem, size = 0x4, offset = 0x4, fixed_abs, tag = 'smem constant byte address 0x4 - core index']
  #allocation1 [shape = 'u32[144,128]{1,0:T(1,128)}', space=vmem, size = 0x12000, scoped, tag = 'internal scratch']
  %s0 = inlined_call_operand.vmem [shape: f32[16,32], index: 0, kind: input, shape index: {}]
  %s1 = inlined_call_operand.vmem [shape: f32[1,32], index: 1, kind: input, shape index: {}]
  %s2 = inlined_call_operand.vmem [shape: f32[1,32], index: 2, kind: input, shape index: {}]
  %s3 = inlined_call_operand.hbm [shape: f32[16,32], index: 3, kind: output, shape index: {}]
  %s4 = sld [smem:[#allocation0]]
  $region22: #{encoder_fwd.19} parent=0
    _
  %s6 = ssub.s32 1, %s4
  %s7 = scalar_select 0, %s6, %s4
  $region1: #{encoder_fwd.19} parent=0
    #allocation2 [shape = 'u8[8192]{0}', space=vmem, size = 0x2000, scoped, tag = 'output window, operand 0, single buffered']
    #allocation3 [shape = 's32[1]{0}', space=sflag, size = 0x4, scoped, tag = 'scoped memory for encoder_fwd.19']
    %8 = vsyncpa [#allocation3], 0
    // Predicated region
    $region2: #{encoder_fwd.19} parent=1 // pred_check
      _
    $region3: #{encoder_fwd.19} parent=1 // pred_check_branch
      %10 = sbr.rel (0) target = $region5
    $region4: #{encoder_fwd.19} parent=1 // pred_region
      _
    $region5: #{encoder_fwd.19} parent=1 // pred_fallthru
      _
    // Predicated region
    $region6: #{encoder_fwd.19} parent=1 // pred_check
      _
    $region7: #{encoder_fwd.19} parent=1 // pred_check_branch
      %12 = sbr.rel (0) target = $region9
    $region8: #{encoder_fwd.19} parent=1 // pred_region
      _
    $region9: #{encoder_fwd.19} parent=1 // pred_fallthru
      _
    // Predicated region
    $region10: #{encoder_fwd.19} parent=1 // pred_check
      _
    $region11: #{encoder_fwd.19} parent=1 // pred_check_branch
      %14 = sbr.rel (0) target = $region13
    $region12: #{encoder_fwd.19} parent=1 // pred_region
      _
    $region13: #{encoder_fwd.19} parent=1 // pred_fallthru
      _
    %v15 = vld [vmem:[%s0] sm:$0xff]
    %v16 = vld [vmem:[%s0 + $0x8] sm:$0xff]
    %vm17 = vcmask 261120
    %v18 = vsel %vm17, %v15, 0.0
    %19 = vadd.xlane.f32.xlu0 %v18
    %v20 = vpop.xlane.xlu0 %19
    %v21 = vsel %vm17, %v16, 0.0
    %22 = vadd.xlane.f32.xlu0 %v21
    %v23 = vpop.xlane.xlu0 %22
    %v24 = vrcp.pop 32.0
    %v25 = vmul.f32 %v20, %v24
    %v26 = vmul.f32 %v23, %v24
    %v27 = vsub.f32 %v15, %v25
    %v28 = vsub.f32 %v16, %v26
    %v29 = vmul.f32 %v27, %v27
    %v30 = vmul.f32 %v28, %v28
    %v31 = vsel %vm17, %v29, 0.0
    %32 = vadd.xlane.f32.xlu0 %v31
    %v33 = vpop.xlane.xlu0 %32
    %v34 = vsel %vm17, %v30, 0.0
    %35 = vadd.xlane.f32.xlu0 %v34
    %v36 = vpop.xlane.xlu0 %35
    %v37 = vmul.f32 %v33, %v24
    %v38 = vmul.f32 %v36, %v24
    %v39 = vadd.f32 %v37, 1e-05
    %v40 = vadd.f32 %v38, 1e-05
    %v41 = vrsqrt.pop %v39
    %v42 = vrsqrt.pop %v40
    %v43 = vmul.f32 %v27, %v41
    %v44 = vmul.f32 %v28, %v42
    %v45 = vld [vmem:[%s1] sm:$0x1]
    %v47 = vlaneseq
    %v48 = vshrl.u32 %v47, 7
    %v49 = vsub.s32 0, %v48
    %v50 = vrot.slane %v45, %v49
    %v52 = vmul.f32 %v43, %v50
    %v53 = vmul.f32 %v44, %v50
    %v54 = vld [vmem:[%s2] sm:$0x1]
    %v56 = vlaneseq
    %v57 = vshrl.u32 %v56, 7
    %v58 = vsub.s32 0, %v57
    %v59 = vrot.slane %v54, %v58
    %v61 = vadd.f32 %v52, %v59
    %v62 = vadd.f32 %v53, %v59
    %63 = vst.msk [vmem:[#allocation2] sm:$0xff] %vm17, %v61
    %64 = vst.msk [vmem:[#allocation2 + $0x8] sm:$0xff] %vm17, %v62
    // Predicated region
    $region14: #{encoder_fwd.19} parent=1 // pred_check
      _
    $region15: #{encoder_fwd.19} parent=1 // pred_check_branch
      %66 = sbr.rel (0) target = $region17
    $region16: #{encoder_fwd.19} parent=1 // pred_region
      %s68 = ssub.s32 256, 256
      %69 = vsyncadd [#allocation3], %s68
      %s70 = sshll.u32 [#allocation2], 4
      %s71 = int_to_ptr.vmem [resolvable:$true] %s70
      %76 = dma.vmem_to_hbm [thread:$0]  %s71, 256, %s3, [#allocation3], 128, 128, 8
    $region17: #{encoder_fwd.19} parent=1 // pred_fallthru
      _
    // Predicated region
    $region18: #{encoder_fwd.19} parent=1 // pred_check
      _
    $region19: #{encoder_fwd.19} parent=1 // pred_check_branch
      %78 = sbr.rel (0) target = $region21
    $region20: #{encoder_fwd.19} parent=1 // pred_region
      %79 = dma.done [#allocation3], 256
    $region21: #{encoder_fwd.19} parent=1 // pred_fallthru
      _
    %80 = vsyncpa [#allocation3], 1

</llo_original>
